<compile_context>
chip_gen: v6e
topology: v6e:2x2x1
jax: 0.10.0
libtpu: 0.0.40
codegen_flags: <defaults>
</compile_context>

<pallas_src>
import functools

import jax
import jax.numpy as jnp
from jax.experimental import pallas as pl
from jax.experimental.pallas import tpu as pltpu

_LANE = 128
_SUBLANE = 8


def _convblock_kernel(x_ref, w_ref, scale_ref, bias_ref, o_ref, xp_ref, col_ref):
    # x_ref:     (1, H, W, Cin)        full (unpadded) image, reused across row tiles
    # w_ref:     (9*Cin, CoutP)        im2col weight matrix, Cout zero-padded to 128
    # scale_ref: (1, CoutP)            folded BN scale  = gamma / sqrt(var + eps)
    # bias_ref:  (1, CoutP)            folded bias      = (conv_b - mean) * scale + beta
    # o_ref:     (1, TH*W, CoutP)      lane-dense output tile
    # xp_ref:    VMEM (TH+2, W+2, Cin) zero-padded halo slab scratch
    # col_ref:   VMEM (TH, W, 9*Cin)   im2col scratch
    _, H, W, Cin = x_ref.shape
    TH = xp_ref.shape[0] - 2

    t = pl.program_id(1)
    n_t = pl.num_programs(1)
    r0 = t * TH

    # ---- build the zero-padded halo slab in VMEM (no HBM-side jnp.pad) ----
    xp_ref[...] = jnp.zeros(xp_ref.shape, xp_ref.dtype)
    xp_ref[1:TH + 1, 1:W + 1, :] = x_ref[0, pl.ds(r0, TH), :, :]

    @pl.when(t > 0)
    def _():  # top halo row (stays zero for the first tile)
        xp_ref[0:1, 1:W + 1, :] = x_ref[0, pl.ds(r0 - 1, 1), :, :]

    @pl.when(t < n_t - 1)
    def _():  # bottom halo row (stays zero for the last tile)
        xp_ref[TH + 1:TH + 2, 1:W + 1, :] = x_ref[0, pl.ds(r0 + TH, 1), :, :]

    # ---- im2col: 9 shifted (TH, W, Cin) taps laid side by side in VMEM ----
    for kh in range(3):
        for kw in range(3):
            i = kh * 3 + kw
            col_ref[:, :, i * Cin:(i + 1) * Cin] = xp_ref[kh:kh + TH, kw:kw + W, :]

    # ---- one MXU matmul: (TH*W, 9*Cin) @ (9*Cin, CoutP), f32 accumulation ----
    col = col_ref[...].reshape(TH * W, 9 * Cin)
    acc = jnp.dot(col, w_ref[...], preferred_element_type=jnp.float32)

    # Fused (conv bias + BatchNorm) affine, then ReLU.  Dropout2d = identity (eval).
    y = jnp.maximum(acc * scale_ref[...] + bias_ref[...], 0.0)
    o_ref[0] = y.astype(o_ref.dtype)


def _pick_tile_h(H, W, max_rows=2048):
    """Largest 8-multiple divisor of H with TH*W <= max_rows; fallback = H."""
    if H % _SUBLANE != 0:
        return H
    cands = [th for th in range(_SUBLANE, H + 1, _SUBLANE)
             if H % th == 0 and th * W <= max_rows]
    return max(cands) if cands else _SUBLANE


def _conv_block_nhwc(x_nhwc, conv_w, conv_b, gamma, beta, run_mean, run_var, eps):
    """NHWC-native entry point (avoids layout transposes for NHWC models)."""
    N, H, W, Cin = x_nhwc.shape
    Cout = conv_w.shape[0]
    CoutP = ((Cout + _LANE - 1) // _LANE) * _LANE      # lane-dense output channels
    K = 9 * Cin

    TH = _pick_tile_h(H, W)
    assert H % TH == 0
    HT = H // TH

    # Fold conv bias + BatchNorm(running stats) into per-channel scale / bias,
    # zero-padded to CoutP (padded channels produce exact zeros, stripped below).
    scale = (gamma / jnp.sqrt(run_var + eps)).astype(jnp.float32)
    bias = ((conv_b - run_mean) * scale + beta).astype(jnp.float32)
    scale_p = jnp.zeros((1, CoutP), jnp.float32).at[0, :Cout].set(scale)
    bias_p = jnp.zeros((1, CoutP), jnp.float32).at[0, :Cout].set(bias)

    # OIHW -> (kh, kw, cin) x cout -> (9*Cin, CoutP) im2col weight matrix.
    # Kept in the activation dtype: pass bf16 activations/weights on v6e/v7x to
    # hit MXU peak; accumulation is f32 regardless.
    w2 = jnp.transpose(conv_w, (2, 3, 1, 0)).reshape(K, Cout).astype(x_nhwc.dtype)
    w2 = jnp.zeros((K, CoutP), x_nhwc.dtype).at[:, :Cout].set(w2)

    itemsize = jnp.dtype(x_nhwc.dtype).itemsize
    flops = 2 * N * H * W * K * Cout
    bytes_accessed = (x_nhwc.size * itemsize
                      + K * CoutP * itemsize
                      + N * H * W * CoutP * itemsize)

    out_flat = pl.pallas_call(
        _convblock_kernel,
        out_shape=jax.ShapeDtypeStruct((N, H * W, CoutP), x_nhwc.dtype),
        grid_spec=pltpu.PrefetchScalarGridSpec(
            num_scalar_prefetch=0,
            grid=(N, HT),
            in_specs=[
                # Full image per n (block index constant in t -> fetched once per n).
                pl.BlockSpec((1, H, W, Cin), lambda n, t: (n, 0, 0, 0)),
                pl.BlockSpec((K, CoutP), lambda n, t: (0, 0)),
                pl.BlockSpec((1, CoutP), lambda n, t: (0, 0)),
                pl.BlockSpec((1, CoutP), lambda n, t: (0, 0)),
            ],
            out_specs=pl.BlockSpec((1, TH * W, CoutP), lambda n, t: (n, t, 0)),
            scratch_shapes=[
                pltpu.VMEM((TH + 2, W + 2, Cin), x_nhwc.dtype),   # halo slab
                pltpu.VMEM((TH, W, K), x_nhwc.dtype),             # im2col buffer
            ],
        ),
        compiler_params=pltpu.CompilerParams(
            dimension_semantics=("parallel", "parallel"),
            vmem_limit_bytes=32 * 1024 * 1024,
        ),
        cost_estimate=pl.CostEstimate(
            flops=flops, transcendentals=0, bytes_accessed=bytes_accessed),
    )(x_nhwc, w2, scale_p, bias_p)

    # Strip channel padding; the reshape back to (N, H, W, ...) is contiguous.
    return out_flat.reshape(N, H, W, CoutP)[..., :Cout]


@functools.partial(jax.jit, static_argnames=("eps",))
def conv_block_forward(x_nchw, conv_w, conv_b, gamma, beta, run_mean, run_var,
                       eps=1e-5):
    """ConvBlock forward, PyTorch NCHW layout: (N, Cin, H, W) -> (N, Cout, H, W).

    The two transposes below are only the PyTorch-layout boundary; NHWC models
    should call _conv_block_nhwc directly and skip them.
    """
    x_nhwc = jnp.transpose(x_nchw, (0, 2, 3, 1))
    out_nhwc = _conv_block_nhwc(x_nhwc, conv_w, conv_b, gamma, beta,
                                run_mean, run_var, eps)
    return jnp.transpose(out_nhwc, (0, 3, 1, 2))


def _reference(x_nchw, conv_w, conv_b, gamma, beta, run_mean, run_var, eps=1e-5):
    """Pure-JAX reference (eval-mode ConvBlock) for correctness checking."""
    y = jax.lax.conv_general_dilated(
        x_nchw, conv_w, window_strides=(1, 1), padding=((1, 1), (1, 1)),
        dimension_numbers=("NCHW", "OIHW", "NCHW"))
    y = y + conv_b[None, :, None, None]
    y = (y - run_mean[None, :, None, None]) / jnp.sqrt(run_var + eps)[None, :, None, None]
    y = y * gamma[None, :, None, None] + beta[None, :, None, None]
    return jnp.maximum(y, 0.0)


if __name__ == "__main__":
    # Small shapes consistent with the module: N=2, Cin=4, Cout=8, H=W=16.
    N, Cin, Cout, H, W = 2, 4, 8, 16, 16
    key = jax.random.PRNGKey(0)
    k_x, k_w, k_b, k_g, k_be, k_m, k_v = jax.random.split(key, 7)

    x = jax.random.normal(k_x, (N, Cin, H, W), dtype=jnp.float32)
    conv_w = jax.random.normal(k_w, (Cout, Cin, 3, 3), dtype=jnp.float32) * 0.1
    conv_b = jax.random.normal(k_b, (Cout,), dtype=jnp.float32) * 0.1
    gamma = 1.0 + 0.1 * jax.random.normal(k_g, (Cout,), dtype=jnp.float32)
    beta = 0.1 * jax.random.normal(k_be, (Cout,), dtype=jnp.float32)
    run_mean = 0.1 * jax.random.normal(k_m, (Cout,), dtype=jnp.float32)
    run_var = jnp.abs(1.0 + 0.1 * jax.random.normal(k_v, (Cout,), dtype=jnp.float32))

    out = conv_block_forward(x, conv_w, conv_b, gamma, beta, run_mean, run_var)
    jax.block_until_ready(out)

    ref = _reference(x, conv_w, conv_b, gamma, beta, run_mean, run_var)
    assert out.shape == (N, Cout, H, W)
    assert jnp.allclose(out, ref, atol=1e-4, rtol=1e-4), "mismatch vs reference"

    print("KERNEL_OK")
</pallas_src>

<mosaic_0001>
module attributes {stable_mosaic.version = 11 : i64} {
  func.func @_convblock_kernel(%arg0: i32, %arg1: i32, %arg2: memref<1x16x16x4xf32, #tpu.memory_space<vmem>>, %arg3: memref<36x128xf32, #tpu.memory_space<vmem>>, %arg4: memref<1x128xf32, #tpu.memory_space<vmem>>, %arg5: memref<1x128xf32, #tpu.memory_space<vmem>>, %arg6: memref<1x256x128xf32, #tpu.memory_space<vmem>>, %arg7: memref<18x18x4xf32, #tpu.memory_space<vmem>>, %arg8: memref<16x16x36xf32, #tpu.memory_space<vmem>>) attributes {dimension_semantics = [#tpu.dimension_semantics<parallel>, #tpu.dimension_semantics<parallel>], iteration_bounds = array<i64: 2, 1>, scalar_prefetch = 0 : i64, scratch_operands = 2 : i64, tpu.core_type = #tpu.core_type<tc>, window_params = [{transform_indices = @transform_0, window_bounds = array<i64: 1, 16, 16, 4>}, {pipeline_mode = #tpu.pipeline_mode<synchronous>, transform_indices = @transform_1, window_bounds = array<i64: 36, 128>}, {pipeline_mode = #tpu.pipeline_mode<synchronous>, transform_indices = @transform_2, window_bounds = array<i64: 1, 128>}, {pipeline_mode = #tpu.pipeline_mode<synchronous>, transform_indices = @transform_3, window_bounds = array<i64: 1, 128>}, {transform_indices = @transform_4, window_bounds = array<i64: 1, 256, 128>}]} {
    %c16_i32 = arith.constant 16 : i32
    %0 = arith.muli %arg1, %c16_i32 : i32
    %cst = arith.constant 0.000000e+00 : f32
    %1 = vector.broadcast %cst : f32 to vector<18x18x4xf32>
    %c0 = arith.constant 0 : index
    %c0_0 = arith.constant 0 : index
    %c0_1 = arith.constant 0 : index
    %2 = vector.load %arg7[%c0, %c0_0, %c0_1] : memref<18x18x4xf32, #tpu.memory_space<vmem>>, vector<18x18x4xf32>
    tpu.vector_store %arg7[%c0, %c0_0, %c0_1], %1 {strides = array<i32>} : memref<18x18x4xf32, #tpu.memory_space<vmem>>, vector<18x18x4xf32>,
    %c0_2 = arith.constant 0 : index
    %3 = arith.index_cast %0 : i32 to index
    %c0_3 = arith.constant 0 : index
    %c0_4 = arith.constant 0 : index
    %4 = vector.load %arg2[%c0_2, %3, %c0_3, %c0_4] : memref<1x16x16x4xf32, #tpu.memory_space<vmem>>, vector<1x16x16x4xf32>
    %5 = vector.shape_cast %4 : vector<1x16x16x4xf32> to vector<16x16x4xf32>
    %c1 = arith.constant 1 : index
    %c1_5 = arith.constant 1 : index
    %c0_6 = arith.constant 0 : index
    %6 = vector.load %arg7[%c1, %c1_5, %c0_6] : memref<18x18x4xf32, #tpu.memory_space<vmem>>, vector<16x16x4xf32>
    tpu.vector_store %arg7[%c1, %c1_5, %c0_6], %5 {strides = array<i32>} : memref<18x18x4xf32, #tpu.memory_space<vmem>>, vector<16x16x4xf32>,
    %c0_i32 = arith.constant 0 : i32
    %7 = arith.cmpi sgt, %arg1, %c0_i32 : i32
    %8 = arith.extui %7 : i1 to i32
    %c0_i32_7 = arith.constant 0 : i32
    %9 = arith.cmpi ne, %8, %c0_i32_7 : i32
    scf.if %9 {
      %c1_i32 = arith.constant 1 : i32
      %46 = arith.subi %0, %c1_i32 : i32
      %c0_69 = arith.constant 0 : index
      %47 = arith.index_cast %46 : i32 to index
      %c0_70 = arith.constant 0 : index
      %c0_71 = arith.constant 0 : index
      %48 = vector.load %arg2[%c0_69, %47, %c0_70, %c0_71] : memref<1x16x16x4xf32, #tpu.memory_space<vmem>>, vector<1x1x16x4xf32>
      %49 = vector.shape_cast %48 : vector<1x1x16x4xf32> to vector<1x16x4xf32>
      %c0_72 = arith.constant 0 : index
      %c1_73 = arith.constant 1 : index
      %c0_74 = arith.constant 0 : index
      %50 = vector.load %arg7[%c0_72, %c1_73, %c0_74] : memref<18x18x4xf32, #tpu.memory_space<vmem>>, vector<1x16x4xf32>
      tpu.vector_store %arg7[%c0_72, %c1_73, %c0_74], %49 {strides = array<i32>} : memref<18x18x4xf32, #tpu.memory_space<vmem>>, vector<1x16x4xf32>,
    } else {
    }
    %c0_i32_8 = arith.constant 0 : i32
    %10 = arith.cmpi slt, %arg1, %c0_i32_8 : i32
    %11 = arith.extui %10 : i1 to i32
    %c0_i32_9 = arith.constant 0 : i32
    %12 = arith.cmpi ne, %11, %c0_i32_9 : i32
    scf.if %12 {
      %c16_i32_69 = arith.constant 16 : i32
      %46 = arith.addi %0, %c16_i32_69 : i32
      %c0_70 = arith.constant 0 : index
      %47 = arith.index_cast %46 : i32 to index
      %c0_71 = arith.constant 0 : index
      %c0_72 = arith.constant 0 : index
      %48 = vector.load %arg2[%c0_70, %47, %c0_71, %c0_72] : memref<1x16x16x4xf32, #tpu.memory_space<vmem>>, vector<1x1x16x4xf32>
      %49 = vector.shape_cast %48 : vector<1x1x16x4xf32> to vector<1x16x4xf32>
      %c17 = arith.constant 17 : index
      %c1_73 = arith.constant 1 : index
      %c0_74 = arith.constant 0 : index
      %50 = vector.load %arg7[%c17, %c1_73, %c0_74] : memref<18x18x4xf32, #tpu.memory_space<vmem>>, vector<1x16x4xf32>
      tpu.vector_store %arg7[%c17, %c1_73, %c0_74], %49 {strides = array<i32>} : memref<18x18x4xf32, #tpu.memory_space<vmem>>, vector<1x16x4xf32>,
    } else {
    }
    %c0_10 = arith.constant 0 : index
    %c0_11 = arith.constant 0 : index
    %c0_12 = arith.constant 0 : index
    %13 = vector.load %arg7[%c0_10, %c0_11, %c0_12] : memref<18x18x4xf32, #tpu.memory_space<vmem>>, vector<16x16x4xf32>
    %c0_13 = arith.constant 0 : index
    %c0_14 = arith.constant 0 : index
    %c0_15 = arith.constant 0 : index
    %14 = vector.load %arg8[%c0_13, %c0_14, %c0_15] : memref<16x16x36xf32, #tpu.memory_space<vmem>>, vector<16x16x4xf32>
    tpu.vector_store %arg8[%c0_13, %c0_14, %c0_15], %13 {strides = array<i32>} : memref<16x16x36xf32, #tpu.memory_space<vmem>>, vector<16x16x4xf32>,
    %c0_16 = arith.constant 0 : index
    %c1_17 = arith.constant 1 : index
    %c0_18 = arith.constant 0 : index
    %15 = vector.load %arg7[%c0_16, %c1_17, %c0_18] : memref<18x18x4xf32, #tpu.memory_space<vmem>>, vector<16x16x4xf32>
    %c0_19 = arith.constant 0 : index
    %c0_20 = arith.constant 0 : index
    %c4 = arith.constant 4 : index
    %16 = vector.load %arg8[%c0_19, %c0_20, %c4] : memref<16x16x36xf32, #tpu.memory_space<vmem>>, vector<16x16x4xf32>
    tpu.vector_store %arg8[%c0_19, %c0_20, %c4], %15 {strides = array<i32>} : memref<16x16x36xf32, #tpu.memory_space<vmem>>, vector<16x16x4xf32>,
    %c0_21 = arith.constant 0 : index
    %c2 = arith.constant 2 : index
    %c0_22 = arith.constant 0 : index
    %17 = vector.load %arg7[%c0_21, %c2, %c0_22] : memref<18x18x4xf32, #tpu.memory_space<vmem>>, vector<16x16x4xf32>
    %c0_23 = arith.constant 0 : index
    %c0_24 = arith.constant 0 : index
    %c8 = arith.constant 8 : index
    %18 = vector.load %arg8[%c0_23, %c0_24, %c8] : memref<16x16x36xf32, #tpu.memory_space<vmem>>, vector<16x16x4xf32>
    tpu.vector_store %arg8[%c0_23, %c0_24, %c8], %17 {strides = array<i32>} : memref<16x16x36xf32, #tpu.memory_space<vmem>>, vector<16x16x4xf32>,
    %c1_25 = arith.constant 1 : index
    %c0_26 = arith.constant 0 : index
    %c0_27 = arith.constant 0 : index
    %19 = vector.load %arg7[%c1_25, %c0_26, %c0_27] : memref<18x18x4xf32, #tpu.memory_space<vmem>>, vector<16x16x4xf32>
    %c0_28 = arith.constant 0 : index
    %c0_29 = arith.constant 0 : index
    %c12 = arith.constant 12 : index
    %20 = vector.load %arg8[%c0_28, %c0_29, %c12] : memref<16x16x36xf32, #tpu.memory_space<vmem>>, vector<16x16x4xf32>
    tpu.vector_store %arg8[%c0_28, %c0_29, %c12], %19 {strides = array<i32>} : memref<16x16x36xf32, #tpu.memory_space<vmem>>, vector<16x16x4xf32>,
    %c1_30 = arith.constant 1 : index
    %c1_31 = arith.constant 1 : index
    %c0_32 = arith.constant 0 : index
    %21 = vector.load %arg7[%c1_30, %c1_31, %c0_32] : memref<18x18x4xf32, #tpu.memory_space<vmem>>, vector<16x16x4xf32>
    %c0_33 = arith.constant 0 : index
    %c0_34 = arith.constant 0 : index
    %c16 = arith.constant 16 : index
    %22 = vector.load %arg8[%c0_33, %c0_34, %c16] : memref<16x16x36xf32, #tpu.memory_space<vmem>>, vector<16x16x4xf32>
    tpu.vector_store %arg8[%c0_33, %c0_34, %c16], %21 {strides = array<i32>} : memref<16x16x36xf32, #tpu.memory_space<vmem>>, vector<16x16x4xf32>,
    %c1_35 = arith.constant 1 : index
    %c2_36 = arith.constant 2 : index
    %c0_37 = arith.constant 0 : index
    %23 = vector.load %arg7[%c1_35, %c2_36, %c0_37] : memref<18x18x4xf32, #tpu.memory_space<vmem>>, vector<16x16x4xf32>
    %c0_38 = arith.constant 0 : index
    %c0_39 = arith.constant 0 : index
    %c20 = arith.constant 20 : index
    %24 = vector.load %arg8[%c0_38, %c0_39, %c20] : memref<16x16x36xf32, #tpu.memory_space<vmem>>, vector<16x16x4xf32>
    tpu.vector_store %arg8[%c0_38, %c0_39, %c20], %23 {strides = array<i32>} : memref<16x16x36xf32, #tpu.memory_space<vmem>>, vector<16x16x4xf32>,
    %c2_40 = arith.constant 2 : index
    %c0_41 = arith.constant 0 : index
    %c0_42 = arith.constant 0 : index
    %25 = vector.load %arg7[%c2_40, %c0_41, %c0_42] : memref<18x18x4xf32, #tpu.memory_space<vmem>>, vector<16x16x4xf32>
    %c0_43 = arith.constant 0 : index
    %c0_44 = arith.constant 0 : index
    %c24 = arith.constant 24 : index
    %26 = vector.load %arg8[%c0_43, %c0_44, %c24] : memref<16x16x36xf32, #tpu.memory_space<vmem>>, vector<16x16x4xf32>
    tpu.vector_store %arg8[%c0_43, %c0_44, %c24], %25 {strides = array<i32>} : memref<16x16x36xf32, #tpu.memory_space<vmem>>, vector<16x16x4xf32>,
    %c2_45 = arith.constant 2 : index
    %c1_46 = arith.constant 1 : index
    %c0_47 = arith.constant 0 : index
    %27 = vector.load %arg7[%c2_45, %c1_46, %c0_47] : memref<18x18x4xf32, #tpu.memory_space<vmem>>, vector<16x16x4xf32>
    %c0_48 = arith.constant 0 : index
    %c0_49 = arith.constant 0 : index
    %c28 = arith.constant 28 : index
    %28 = vector.load %arg8[%c0_48, %c0_49, %c28] : memref<16x16x36xf32, #tpu.memory_space<vmem>>, vector<16x16x4xf32>
    tpu.vector_store %arg8[%c0_48, %c0_49, %c28], %27 {strides = array<i32>} : memref<16x16x36xf32, #tpu.memory_space<vmem>>, vector<16x16x4xf32>,
    %c2_50 = arith.constant 2 : index
    %c2_51 = arith.constant 2 : index
    %c0_52 = arith.constant 0 : index
    %29 = vector.load %arg7[%c2_50, %c2_51, %c0_52] : memref<18x18x4xf32, #tpu.memory_space<vmem>>, vector<16x16x4xf32>
    %c0_53 = arith.constant 0 : index
    %c0_54 = arith.constant 0 : index
    %c32 = arith.constant 32 : index
    %30 = vector.load %arg8[%c0_53, %c0_54, %c32] : memref<16x16x36xf32, #tpu.memory_space<vmem>>, vector<16x16x4xf32>
    tpu.vector_store %arg8[%c0_53, %c0_54, %c32], %29 {strides = array<i32>} : memref<16x16x36xf32, #tpu.memory_space<vmem>>, vector<16x16x4xf32>,
    %c0_55 = arith.constant 0 : index
    %c0_56 = arith.constant 0 : index
    %c0_57 = arith.constant 0 : index
    %31 = vector.load %arg8[%c0_55, %c0_56, %c0_57] : memref<16x16x36xf32, #tpu.memory_space<vmem>>, vector<16x16x36xf32>
    %32 = vector.shape_cast %31 : vector<16x16x36xf32> to vector<256x36xf32>
    %c0_58 = arith.constant 0 : index
    %c0_59 = arith.constant 0 : index
    %33 = vector.load %arg3[%c0_58, %c0_59] : memref<36x128xf32, #tpu.memory_space<vmem>>, vector<36x128xf32>
    %cst_60 = arith.constant dense<0.000000e+00> : vector<256x128xf32>
    %34 = tpu.matmul %32, %33, %cst_60 {dimension_numbers = #tpu.dot_dimension_numbers<[1], [0], [0], [1], [0, 0, 1, 1], [], []>} : vector<256x36xf32>, vector<36x128xf32>, vector<256x128xf32> -> vector<256x128xf32>
    %c0_61 = arith.constant 0 : index
    %c0_62 = arith.constant 0 : index
    %35 = vector.load %arg4[%c0_61, %c0_62] : memref<1x128xf32, #tpu.memory_space<vmem>>, vector<1x128xf32>
    %36 = vector.broadcast %35 : vector<1x128xf32> to vector<256x128xf32>
    %37 = arith.mulf %34, %36 : vector<256x128xf32>
    %c0_63 = arith.constant 0 : index
    %c0_64 = arith.constant 0 : index
    %38 = vector.load %arg5[%c0_63, %c0_64] : memref<1x128xf32, #tpu.memory_space<vmem>>, vector<1x128xf32>
    %39 = vector.broadcast %38 : vector<1x128xf32> to vector<256x128xf32>
    %40 = arith.addf %37, %39 : vector<256x128xf32>
    %cst_65 = arith.constant 0.000000e+00 : f32
    %41 = vector.broadcast %cst_65 : f32 to vector<256x128xf32>
    %42 = arith.maximumf %40, %41 : vector<256x128xf32>
    %c0_66 = arith.constant 0 : index
    %c0_67 = arith.constant 0 : index
    %c0_68 = arith.constant 0 : index
    %43 = vector.load %arg6[%c0_66, %c0_67, %c0_68] : memref<1x256x128xf32, #tpu.memory_space<vmem>>, vector<1x256x128xf32>
    %44 = vector.shape_cast %43 : vector<1x256x128xf32> to vector<256x128xf32>
    %45 = vector.shape_cast %42 : vector<256x128xf32> to vector<1x256x128xf32>
    tpu.vector_store %arg6[%c0_66, %c0_67, %c0_68], %45 {strides = array<i32>} : memref<1x256x128xf32, #tpu.memory_space<vmem>>, vector<1x256x128xf32>,
    return
  }
  func.func @transform_0(%arg0: i32, %arg1: i32) -> (i32, i32, i32, i32) {
    %c0_i32 = arith.constant 0 : i32
    %c0_i32_0 = arith.constant 0 : i32
    %c0_i32_1 = arith.constant 0 : i32
    %c0_i32_2 = arith.constant 0 : i32
    return %arg0, %c0_i32, %c0_i32_0, %c0_i32_1 : i32, i32, i32, i32
  }
  func.func @transform_1(%arg0: i32, %arg1: i32) -> (i32, i32) {
    %c0_i32 = arith.constant 0 : i32
    %c0_i32_0 = arith.constant 0 : i32
    %c0_i32_1 = arith.constant 0 : i32
    return %c0_i32, %c0_i32_0 : i32, i32
  }
  func.func @transform_2(%arg0: i32, %arg1: i32) -> (i32, i32) {
    %c0_i32 = arith.constant 0 : i32
    %c0_i32_0 = arith.constant 0 : i32
    %c0_i32_1 = arith.constant 0 : i32
    return %c0_i32, %c0_i32_0 : i32, i32
  }
  func.func @transform_3(%arg0: i32, %arg1: i32) -> (i32, i32) {
    %c0_i32 = arith.constant 0 : i32
    %c0_i32_0 = arith.constant 0 : i32
    %c0_i32_1 = arith.constant 0 : i32
    return %c0_i32, %c0_i32_0 : i32, i32
  }
  func.func @transform_4(%arg0: i32, %arg1: i32) -> (i32, i32, i32) {
    %c0_i32 = arith.constant 0 : i32
    %c0_i32_0 = arith.constant 0 : i32
    return %arg0, %arg1, %c0_i32 : i32, i32, i32
  }
}

</mosaic_0001>

<llo_original>
// kernel: conv_block_forward.1
$region0: #{conv_block_forward.1}
  #allocation0 [shape = 'u32[]', space=smem, size = 0x4, offset = 0x4, fixed_abs, tag = 'smem constant byte address 0x4 - core index']
  #allocation1 [shape = 'u32[144,128]{1,0:T(1,128)}', space=vmem, size = 0x12000, scoped, tag = 'internal scratch']
  #allocation2 [shape = 'f32[18,18,4]{2,1,0:T(8,128)}', space=vmem, size = 0x36000, scoped, tag = 'scratch operand']
  #allocation3 [shape = 'f32[16,16,36]{2,1,0:T(8,128)}', space=vmem, size = 0x20000, scoped, tag = 'scratch operand']
  %s0 = inlined_call_operand.vmem [shape: f32[2,16,16,4], index: 0, kind: input, shape index: {}]
  %s1 = inlined_call_operand.vmem [shape: f32[36,128], index: 1, kind: input, shape index: {}]
  %s2 = inlined_call_operand.vmem [shape: f32[1,128], index: 2, kind: input, shape index: {}]
  %s3 = inlined_call_operand.vmem [shape: f32[1,128], index: 3, kind: input, shape index: {}]
  %s4 = inlined_call_operand.vmem [shape: f32[2,256,128], index: 4, kind: output, shape index: {}]
  %s5 = sld [smem:[#allocation0]]
  $region57: #{conv_block_forward.1} parent=0
    _
  %s7 = ssub.s32 1, %s5
  %s8 = scalar_select 0, %s7, %s5
  loop: start=0, step=1, limit=4
  $region2: #{conv_block_forward.1} parent=0 // loop_pre_header
    _
  $region3: #{conv_block_forward.1} parent=0 // loop_header
    %s10 = sphi 0, %s14
    %p11 = scmp.ge.s32.totalorder %s10, 4
    %s17 = sphi 0, %s29
    %s18 = sphi 0, %s25
    %s19 = sphi 0, %s17
    %s20 = sphi 0, %s18
    %s21 = sphi 0, %s19
    %s22 = sphi 0, %s20
    %s32 = sphi 0, %s34
    %s35 = sphi 0, %s32
    %s36 = sphi 0, %s35
    %s52 = sphi 0, %s36
    %s56 = sphi 0, %s56
    %s58 = sphi 0, %s56
    %s59 = sphi 0, %s58
    %s73 = sphi 0, %s59
    %s77 = sphi 0, %s77
    %s79 = sphi 0, %s77
    %s80 = sphi 0, %s79
    %s94 = sphi 0, %s80
    %s98 = sphi 0, %s98
    %s100 = sphi 0, %s98
    %s101 = sphi 0, %s100
    %s115 = sphi 0, %s101
    %s123 = sphi 0, %s125
    %s126 = sphi 0, %s123
    %s127 = sphi 0, %s126
    %s143 = sphi 0, %s127
  $region4: #{conv_block_forward.1} parent=0 // loop_header_branch
    %13 = sbr.rel (%p11) target = $region8
  $region5: #{conv_block_forward.1} parent=0 // loop_body
    %s15 = ssub.s32 %s10, 1
    %s16 = ssub.s32 %s10, 2
    %s23 = sadd.s32 1, %s18
    %p24 = scmp.ge.s32.totalorder %s23, 1
    %s25 = scalar_select %p24, 0, %s23
    %s26 = sadd.s32 1, %s17
    %s27 = scalar_select %p24, %s26, %s17
    %p28 = scmp.ge.s32.totalorder %s27, 2
    %s29 = scalar_select %p28, 0, %s27
    %s30 = ssub.s32 %s17, %s29
    %p31 = scmp.eq.s32.totalorder %s30, 0
    %s33 = sadd.s32 %s32, 1
    %s34 = scalar_select %p31, %s32, %s33
    %p37 = pneg %p31
    %p38 = scmp.eq.s32.totalorder %s10, 1
    %p39 = por %p37, %p38
    %p40 = scmp.ne.s32.totalorder %s32, %s35
    %p41 = scmp.eq.s32.totalorder %s10, 0
    %p42 = por %p40, %p41
    %p43 = scmp.ne.s32.totalorder %s32, %s35
    %p44 = scmp.eq.s32.totalorder %s15, 1
    %p45 = por %p43, %p44
    %p46 = scmp.ne.s32.totalorder %s35, %s36
    %p47 = scmp.eq.s32.totalorder %s15, 0
    %p48 = por %p46, %p47
    %p49 = scmp.ne.s32.totalorder %s35, %s36
    %p50 = scmp.eq.s32.totalorder %s16, 1
    %p51 = por %p49, %p50
    %p53 = scmp.ne.s32.totalorder %s36, %s52
    %p54 = scmp.eq.s32.totalorder %s16, 0
    %p55 = por %p53, %p54
    %s57 = sadd.s32 %s56, 1
    %p60 = scmp.eq.s32.totalorder %s10, 1
    %p61 = scmp.ne.s32.totalorder %s56, %s58
    %p62 = scmp.eq.s32.totalorder %s10, 0
    %p63 = por %p61, %p62
    %p64 = scmp.ne.s32.totalorder %s56, %s58
    %p65 = scmp.eq.s32.totalorder %s15, 1
    %p66 = por %p64, %p65
    %p67 = scmp.ne.s32.totalorder %s58, %s59
    %p68 = scmp.eq.s32.totalorder %s15, 0
    %p69 = por %p67, %p68
    %p70 = scmp.ne.s32.totalorder %s58, %s59
    %p71 = scmp.eq.s32.totalorder %s16, 1
    %p72 = por %p70, %p71
    %p74 = scmp.ne.s32.totalorder %s59, %s73
    %p75 = scmp.eq.s32.totalorder %s16, 0
    %p76 = por %p74, %p75
    %s78 = sadd.s32 %s77, 1
    %p81 = scmp.eq.s32.totalorder %s10, 1
    %p82 = scmp.ne.s32.totalorder %s77, %s79
    %p83 = scmp.eq.s32.totalorder %s10, 0
    %p84 = por %p82, %p83
    %p85 = scmp.ne.s32.totalorder %s77, %s79
    %p86 = scmp.eq.s32.totalorder %s15, 1
    %p87 = por %p85, %p86
    %p88 = scmp.ne.s32.totalorder %s79, %s80
    %p89 = scmp.eq.s32.totalorder %s15, 0
    %p90 = por %p88, %p89
    %p91 = scmp.ne.s32.totalorder %s79, %s80
    %p92 = scmp.eq.s32.totalorder %s16, 1
    %p93 = por %p91, %p92
    %p95 = scmp.ne.s32.totalorder %s80, %s94
    %p96 = scmp.eq.s32.totalorder %s16, 0
    %p97 = por %p95, %p96
    %s99 = sadd.s32 %s98, 1
    %p102 = scmp.eq.s32.totalorder %s10, 1
    %p103 = scmp.ne.s32.totalorder %s98, %s100
    %p104 = scmp.eq.s32.totalorder %s10, 0
    %p105 = por %p103, %p104
    %p106 = scmp.ne.s32.totalorder %s98, %s100
    %p107 = scmp.eq.s32.totalorder %s15, 1
    %p108 = por %p106, %p107
    %p109 = scmp.ne.s32.totalorder %s100, %s101
    %p110 = scmp.eq.s32.totalorder %s15, 0
    %p111 = por %p109, %p110
    %p112 = scmp.ne.s32.totalorder %s100, %s101
    %p113 = scmp.eq.s32.totalorder %s16, 1
    %p114 = por %p112, %p113
    %p116 = scmp.ne.s32.totalorder %s101, %s115
    %p117 = scmp.eq.s32.totalorder %s16, 0
    %p118 = por %p116, %p117
    %s119 = ssub.s32 %s17, %s29
    %s120 = ssub.s32 %s18, %s25
    %s121 = sor.u32 %s119, %s120
    %p122 = scmp.eq.s32.totalorder %s121, 0
    %s124 = sadd.s32 %s123, 1
    %s125 = scalar_select %p122, %s123, %s124
    %p128 = pneg %p122
    %p129 = scmp.eq.s32.totalorder %s10, 1
    %p130 = por %p128, %p129
    %p131 = scmp.ne.s32.totalorder %s123, %s126
    %p132 = scmp.eq.s32.totalorder %s10, 0
    %p133 = por %p131, %p132
    %p134 = scmp.ne.s32.totalorder %s123, %s126
    %p135 = scmp.eq.s32.totalorder %s15, 1
    %p136 = por %p134, %p135
    %p137 = scmp.ne.s32.totalorder %s126, %s127
    %p138 = scmp.eq.s32.totalorder %s15, 0
    %p139 = por %p137, %p138
    %p140 = scmp.ne.s32.totalorder %s126, %s127
    %p141 = scmp.eq.s32.totalorder %s16, 1
    %p142 = por %p140, %p141
    %p144 = scmp.ne.s32.totalorder %s127, %s143
    %p145 = scmp.eq.s32.totalorder %s16, 0
    %p146 = por %p144, %p145
    %p147 = scmp.le.s32.totalorder 1, %s10
    %p148 = scmp.lt.s32.totalorder %s10, 3
    %p149 = pnand %p147, %p148
    %p150 = pneg %p149
    // Predicated region
    $region9: #{conv_block_forward.1} parent=5 // pred_check
      _
    $region10: #{conv_block_forward.1} parent=5 // pred_check_branch
      %152 = sbr.rel (%p149) target = $region12
    $region11: #{conv_block_forward.1} parent=5 // pred_region
      %s153 = ssub.s32 %s10, 1
      // Predicated region
      $region13: #{conv_block_forward.1} parent=11 // pred_check
        %p154 = pneg %p69
      $region14: #{conv_block_forward.1} parent=11 // pred_check_branch
        %156 = sbr.rel (%p154) target = $region16
      $region15: #{conv_block_forward.1} parent=11 // pred_region
        _
      $region16: #{conv_block_forward.1} parent=11 // pred_fallthru
        _
      // Predicated region
      $region17: #{conv_block_forward.1} parent=11 // pred_check
        %p157 = pneg %p90
      $region18: #{conv_block_forward.1} parent=11 // pred_check_branch
        %159 = sbr.rel (%p157) target = $region20
      $region19: #{conv_block_forward.1} parent=11 // pred_region
        _
      $region20: #{conv_block_forward.1} parent=11 // pred_fallthru
        _
      // Predicated region
      $region21: #{conv_block_forward.1} parent=11 // pred_check
        %p160 = pneg %p111
      $region22: #{conv_block_forward.1} parent=11 // pred_check_branch
        %162 = sbr.rel (%p160) target = $region24
      $region23: #{conv_block_forward.1} parent=11 // pred_region
        _
      $region24: #{conv_block_forward.1} parent=11 // pred_fallthru
        _
    $region12: #{conv_block_forward.1} parent=5 // pred_fallthru
      _
    %p163 = scmp.lt.s32.totalorder %s10, 2
    // Predicated region
    $region25: #{conv_block_forward.1} parent=5 // pred_check
      %p164 = pneg %p163
    $region26: #{conv_block_forward.1} parent=5 // pred_check_branch
      %166 = sbr.rel (%p164) target = $region28
    $region27: #{conv_block_forward.1} parent=5 // pred_region
      // Predicated region
      $region29: #{conv_block_forward.1} parent=27 // pred_check
        %p167 = pneg %p42
      $region30: #{conv_block_forward.1} parent=27 // pred_check_branch
        %169 = sbr.rel (%p167) target = $region32
      $region31: #{conv_block_forward.1} parent=27 // pred_region
        %p170 = scmp.lt.s32.totalorder %s17, 1
        %s171 = scalar_select %p170, %s17, 1
        %s172 = smul.addr %s171, 32
        %s173 = smul.addr %s172, 8
        %s174 = scalar_lea.vmem %s0, %s173
      $region32: #{conv_block_forward.1} parent=27 // pred_fallthru
        _
    $region28: #{conv_block_forward.1} parent=5 // pred_fallthru
      _
    %p175 = scmp.le.s32.totalorder 1, %s10
    %p176 = scmp.lt.s32.totalorder %s10, 3
    %p177 = pnand %p175, %p176
    %p178 = pneg %p177
    // Predicated region
    $region33: #{conv_block_forward.1} parent=5 // pred_check
      _
    $region34: #{conv_block_forward.1} parent=5 // pred_check_branch
      %180 = sbr.rel (%p177) target = $region36
    $region35: #{conv_block_forward.1} parent=5 // pred_region
      %s181 = ssub.s32 %s10, 1
      %p182 = scmp.lt.s32.totalorder %s19, 1
      %s183 = scalar_select %p182, %s19, 1
      %s184 = smul.addr %s183, 32
      %s185 = smul.addr %s184, 8
      %s186 = scalar_lea.vmem %s0, %s185
      %p187 = pneg %p48
      %p188 = pneg %p45
      %p189 = pneg %p69
      %p190 = pneg %p66
      %p191 = pneg %p90
      %p192 = pneg %p87
      %p193 = pneg %p111
      %p194 = pneg %p108
      %p195 = pneg %p139
      %p196 = pneg %p136
      %s197 = smul.u32 32, %s20
      %p198 = scmp.lt.s32.totalorder %s19, 1
      %s199 = scalar_select %p198, %s19, 1
      %p200 = scmp.lt.s32.totalorder %s197, 31
      %s201 = scalar_select %p200, %s197, 31
      %s202 = smul.addr %s199, 32
      %s203 = sadd.s32 %s201, %s202
      %s204 = smul.addr %s203, 8
      %s205 = scalar_lea.vmem %s4, %s204
      %p206 = scmp.lt.s32.totalorder %s19, 1
      %s207 = scalar_select %p206, %s19, 1
      %s208 = smul.addr %s207, 32
      %s209 = smul.addr %s208, 8
      %s210 = scalar_lea.vmem %s0, %s209
      %s211 = smul.u32 32, %s20
      %p212 = scmp.lt.s32.totalorder %s19, 1
      %s213 = scalar_select %p212, %s19, 1
      %p214 = scmp.lt.s32.totalorder %s211, 31
      %s215 = scalar_select %p214, %s211, 31
      %s216 = smul.addr %s213, 32
      %s217 = sadd.s32 %s215, %s216
      %s218 = smul.addr %s217, 8
      %s219 = scalar_lea.vmem %s4, %s218
      %s220 = smul.u32 32, %s20
      %s221 = smul.u32 %s20, 16
      %vm222 = vcmask 31744
      %223 = vst.msk [vmem:[#allocation2] sm:$0xff] %vm222, 0.0
      %224 = vst.msk [vmem:[#allocation2 + $0x8] sm:$0xff] %vm222, 0.0
      %vm225 = vcmask 25600
      %226 = vst.msk [vmem:[#allocation2 + $0x10] sm:$0x3] %vm225, 0.0
      %227 = vst.msk [vmem:[#allocation2 + $0x18] sm:$0xff] %vm222, 0.0
      %228 = vst.msk [vmem:[#allocation2 + $0x20] sm:$0xff] %vm222, 0.0
      %229 = vst.msk [vmem:[#allocation2 + $0x28] sm:$0x3] %vm225, 0.0
      %230 = vst.msk [vmem:[#allocation2 + $0x30] sm:$0xff] %vm222, 0.0
      %231 = vst.msk [vmem:[#allocation2 + $0x38] sm:$0xff] %vm222, 0.0
      %232 = vst.msk [vmem:[#allocation2 + $0x40] sm:$0x3] %vm225, 0.0
      %233 = vst.msk [vmem:[#allocation2 + $0x48] sm:$0xff] %vm222, 0.0
      %234 = vst.msk [vmem:[#allocation2 + $0x50] sm:$0xff] %vm222, 0.0
      %235 = vst.msk [vmem:[#allocation2 + $0x58] sm:$0x3] %vm225, 0.0
      %236 = vst.msk [vmem:[#allocation2 + $0x60] sm:$0xff] %vm222, 0.0
      %237 = vst.msk [vmem:[#allocation2 + $0x68] sm:$0xff] %vm222, 0.0
      %238 = vst.msk [vmem:[#allocation2 + $0x70] sm:$0x3] %vm225, 0.0
      %239 = vst.msk [vmem:[#allocation2 + $0x78] sm:$0xff] %vm222, 0.0
      %240 = vst.msk [vmem:[#allocation2 + $0x80] sm:$0xff] %vm222, 0.0
      %241 = vst.msk [vmem:[#allocation2 + $0x88] sm:$0x3] %vm225, 0.0
      %242 = vst.msk [vmem:[#allocation2 + $0x90] sm:$0xff] %vm222, 0.0
      %243 = vst.msk [vmem:[#allocation2 + $0x98] sm:$0xff] %vm222, 0.0
      %244 = vst.msk [vmem:[#allocation2 + $0xa0] sm:$0x3] %vm225, 0.0
      %245 = vst.msk [vmem:[#allocation2 + $0xa8] sm:$0xff] %vm222, 0.0
      %246 = vst.msk [vmem:[#allocation2 + $0xb0] sm:$0xff] %vm222, 0.0
      %247 = vst.msk [vmem:[#allocation2 + $0xb8] sm:$0x3] %vm225, 0.0
      %248 = vst.msk [vmem:[#allocation2 + $0xc0] sm:$0xff] %vm222, 0.0
      %249 = vst.msk [vmem:[#allocation2 + $0xc8] sm:$0xff] %vm222, 0.0
      %250 = vst.msk [vmem:[#allocation2 + $0xd0] sm:$0x3] %vm225, 0.0
      %251 = vst.msk [vmem:[#allocation2 + $0xd8] sm:$0xff] %vm222, 0.0
      %252 = vst.msk [vmem:[#allocation2 + $0xe0] sm:$0xff] %vm222, 0.0
      %253 = vst.msk [vmem:[#allocation2 + $0xe8] sm:$0x3] %vm225, 0.0
      %254 = vst.msk [vmem:[#allocation2 + $0xf0] sm:$0xff] %vm222, 0.0
      %255 = vst.msk [vmem:[#allocation2 + $0xf8] sm:$0xff] %vm222, 0.0
      %256 = vst.msk [vmem:[#allocation2 + $0x100] sm:$0x3] %vm225, 0.0
      %257 = vst.msk [vmem:[#allocation2 + $0x108] sm:$0xff] %vm222, 0.0
      %258 = vst.msk [vmem:[#allocation2 + $0x110] sm:$0xff] %vm222, 0.0
      %259 = vst.msk [vmem:[#allocation2 + $0x118] sm:$0x3] %vm225, 0.0
      %260 = vst.msk [vmem:[#allocation2 + $0x120] sm:$0xff] %vm222, 0.0
      %261 = vst.msk [vmem:[#allocation2 + $0x128] sm:$0xff] %vm222, 0.0
      %262 = vst.msk [vmem:[#allocation2 + $0x130] sm:$0x3] %vm225, 0.0
      %263 = vst.msk [vmem:[#allocation2 + $0x138] sm:$0xff] %vm222, 0.0
      %264 = vst.msk [vmem:[#allocation2 + $0x140] sm:$0xff] %vm222, 0.0
      %265 = vst.msk [vmem:[#allocation2 + $0x148] sm:$0x3] %vm225, 0.0
      %266 = vst.msk [vmem:[#allocation2 + $0x150] sm:$0xff] %vm222, 0.0
      %267 = vst.msk [vmem:[#allocation2 + $0x158] sm:$0xff] %vm222, 0.0
      %268 = vst.msk [vmem:[#allocation2 + $0x160] sm:$0x3] %vm225, 0.0
      %269 = vst.msk [vmem:[#allocation2 + $0x168] sm:$0xff] %vm222, 0.0
      %270 = vst.msk [vmem:[#allocation2 + $0x170] sm:$0xff] %vm222, 0.0
      %271 = vst.msk [vmem:[#allocation2 + $0x178] sm:$0x3] %vm225, 0.0
      %272 = vst.msk [vmem:[#allocation2 + $0x180] sm:$0xff] %vm222, 0.0
      %273 = vst.msk [vmem:[#allocation2 + $0x188] sm:$0xff] %vm222, 0.0
      %274 = vst.msk [vmem:[#allocation2 + $0x190] sm:$0x3] %vm225, 0.0
      %275 = vst.msk [vmem:[#allocation2 + $0x198] sm:$0xff] %vm222, 0.0
      %276 = vst.msk [vmem:[#allocation2 + $0x1a0] sm:$0xff] %vm222, 0.0
      %277 = vst.msk [vmem:[#allocation2 + $0x1a8] sm:$0x3] %vm225, 0.0
      %s278 = smul.u32 %s221, 16
      %s279 = scalar_lea.vmem %s210, %s278
      %v280 = vld [vmem:[%s279] sm:$0xff]
      %v281 = vld [vmem:[%s279 + $0x8] sm:$0xff]
      %v282 = vld [vmem:[%s279 + $0x10] sm:$0xff]
      %v283 = vld [vmem:[%s279 + $0x18] sm:$0xff]
      %v284 = vld [vmem:[%s279 + $0x20] sm:$0xff]
      %v285 = vld [vmem:[%s279 + $0x28] sm:$0xff]
      %v286 = vld [vmem:[%s279 + $0x30] sm:$0xff]
      %v287 = vld [vmem:[%s279 + $0x38] sm:$0xff]
      %v288 = vld [vmem:[%s279 + $0x40] sm:$0xff]
      %v289 = vld [vmem:[%s279 + $0x48] sm:$0xff]
      %v290 = vld [vmem:[%s279 + $0x50] sm:$0xff]
      %v291 = vld [vmem:[%s279 + $0x58] sm:$0xff]
      %v292 = vld [vmem:[%s279 + $0x60] sm:$0xff]
      %v293 = vld [vmem:[%s279 + $0x68] sm:$0xff]
      %v294 = vld [vmem:[%s279 + $0x70] sm:$0xff]
      %v295 = vld [vmem:[%s279 + $0x78] sm:$0xff]
      %v296 = vld [vmem:[%s279 + $0x80] sm:$0xff]
      %v297 = vld [vmem:[%s279 + $0x88] sm:$0xff]
      %v298 = vld [vmem:[%s279 + $0x90] sm:$0xff]
      %v299 = vld [vmem:[%s279 + $0x98] sm:$0xff]
      %v300 = vld [vmem:[%s279 + $0xa0] sm:$0xff]
      %v301 = vld [vmem:[%s279 + $0xa8] sm:$0xff]
      %v302 = vld [vmem:[%s279 + $0xb0] sm:$0xff]
      %v303 = vld [vmem:[%s279 + $0xb8] sm:$0xff]
      %v304 = vld [vmem:[%s279 + $0xc0] sm:$0xff]
      %v305 = vld [vmem:[%s279 + $0xc8] sm:$0xff]
      %v306 = vld [vmem:[%s279 + $0xd0] sm:$0xff]
      %v307 = vld [vmem:[%s279 + $0xd8] sm:$0xff]
      %v308 = vld [vmem:[%s279 + $0xe0] sm:$0xff]
      %v309 = vld [vmem:[%s279 + $0xe8] sm:$0xff]
      %v310 = vld [vmem:[%s279 + $0xf0] sm:$0xff]
      %v311 = vld [vmem:[%s279 + $0xf8] sm:$0xff]
      %s312 = scalar_lea.vmem [#allocation2], 24
      %313 = vst.msk [vmem:[%s312 + $0x1] sm:$0xff] %vm222, %v280
      %314 = vst.msk [vmem:[%s312 + $0x9] sm:$0xff] %vm222, %v281
      %315 = vst.msk [vmem:[%s312 + $0x19] sm:$0xff] %vm222, %v282
      %316 = vst.msk [vmem:[%s312 + $0x21] sm:$0xff] %vm222, %v283
      %317 = vst.msk [vmem:[%s312 + $0x31] sm:$0xff] %vm222, %v284
      %318 = vst.msk [vmem:[%s312 + $0x39] sm:$0xff] %vm222, %v285
      %319 = vst.msk [vmem:[%s312 + $0x49] sm:$0xff] %vm222, %v286
      %320 = vst.msk [vmem:[%s312 + $0x51] sm:$0xff] %vm222, %v287
      %321 = vst.msk [vmem:[%s312 + $0x61] sm:$0xff] %vm222, %v288
      %322 = vst.msk [vmem:[%s312 + $0x69] sm:$0xff] %vm222, %v289
      %323 = vst.msk [vmem:[%s312 + $0x79] sm:$0xff] %vm222, %v290
      %324 = vst.msk [vmem:[%s312 + $0x81] sm:$0xff] %vm222, %v291
      %325 = vst.msk [vmem:[%s312 + $0x91] sm:$0xff] %vm222, %v292
      %326 = vst.msk [vmem:[%s312 + $0x99] sm:$0xff] %vm222, %v293
      %327 = vst.msk [vmem:[%s312 + $0xa9] sm:$0xff] %vm222, %v294
      %328 = vst.msk [vmem:[%s312 + $0xb1] sm:$0xff] %vm222, %v295
      %329 = vst.msk [vmem:[%s312 + $0xc1] sm:$0xff] %vm222, %v296
      %330 = vst.msk [vmem:[%s312 + $0xc9] sm:$0xff] %vm222, %v297
      %331 = vst.msk [vmem:[%s312 + $0xd9] sm:$0xff] %vm222, %v298
      %332 = vst.msk [vmem:[%s312 + $0xe1] sm:$0xff] %vm222, %v299
      %333 = vst.msk [vmem:[%s312 + $0xf1] sm:$0xff] %vm222, %v300
      %334 = vst.msk [vmem:[%s312 + $0xf9] sm:$0xff] %vm222, %v301
      %335 = vst.msk [vmem:[%s312 + $0x109] sm:$0xff] %vm222, %v302
      %336 = vst.msk [vmem:[%s312 + $0x111] sm:$0xff] %vm222, %v303
      %337 = vst.msk [vmem:[%s312 + $0x121] sm:$0xff] %vm222, %v304
      %338 = vst.msk [vmem:[%s312 + $0x129] sm:$0xff] %vm222, %v305
      %339 = vst.msk [vmem:[%s312 + $0x139] sm:$0xff] %vm222, %v306
      %340 = vst.msk [vmem:[%s312 + $0x141] sm:$0xff] %vm222, %v307
      %341 = vst.msk [vmem:[%s312 + $0x151] sm:$0xff] %vm222, %v308
      %342 = vst.msk [vmem:[%s312 + $0x159] sm:$0xff] %vm222, %v309
      %343 = vst.msk [vmem:[%s312 + $0x169] sm:$0xff] %vm222, %v310
      %344 = vst.msk [vmem:[%s312 + $0x171] sm:$0xff] %vm222, %v311
      %p345 = scmp.gt.s32.totalorder %s20, 0
      // Predicated region
      $region37: #{conv_block_forward.1} parent=35 // pred_check
        %p346 = pneg %p345
      $region38: #{conv_block_forward.1} parent=35 // pred_check_branch
        %348 = sbr.rel (%p346) target = $region40
      $region39: #{conv_block_forward.1} parent=35 // pred_region
        %s349 = ssub.s32 %s221, 1
        %s350 = smul.u32 %s349, 16
        %s351 = scalar_lea.vmem %s210, %s350
        %v352 = vld [vmem:[%s351] sm:$0xff]
        %v353 = vld [vmem:[%s351 + $0x8] sm:$0xff]
        %354 = vst.msk [vmem:[#allocation2 + $0x1] sm:$0xff] %vm222, %v352
        %355 = vst.msk [vmem:[#allocation2 + $0x9] sm:$0xff] %vm222, %v353
      $region40: #{conv_block_forward.1} parent=35 // pred_fallthru
        _
      %p356 = scmp.lt.s32.totalorder %s20, 0
      // Predicated region
      $region41: #{conv_block_forward.1} parent=35 // pred_check
        %p357 = pneg %p356
      $region42: #{conv_block_forward.1} parent=35 // pred_check_branch
        %359 = sbr.rel (%p357) target = $region44
      $region43: #{conv_block_forward.1} parent=35 // pred_region
        %s360 = sadd.s32 %s221, 16
        %s361 = smul.u32 %s360, 16
        %s362 = scalar_lea.vmem %s210, %s361
        %v363 = vld [vmem:[%s362] sm:$0xff]
        %v364 = vld [vmem:[%s362 + $0x8] sm:$0xff]
        %s365 = scalar_lea.vmem [#allocation2], 408
        %366 = vst.msk [vmem:[%s365 + $0x1] sm:$0xff] %vm222, %v363
        %367 = vst.msk [vmem:[%s365 + $0x9] sm:$0xff] %vm222, %v364
      $region44: #{conv_block_forward.1} parent=35 // pred_fallthru
        _
      %v368 = vld [vmem:[#allocation2] sm:$0xff]
      %v369 = vld [vmem:[#allocation2 + $0x8] sm:$0xff]
      %v370 = vld [vmem:[#allocation2 + $0x18] sm:$0xff]
      %v371 = vld [vmem:[#allocation2 + $0x20] sm:$0xff]
      %v372 = vld [vmem:[#allocation2 + $0x30] sm:$0xff]
      %v373 = vld [vmem:[#allocation2 + $0x38] sm:$0xff]
      %v374 = vld [vmem:[#allocation2 + $0x48] sm:$0xff]
      %v375 = vld [vmem:[#allocation2 + $0x50] sm:$0xff]
      %v376 = vld [vmem:[#allocation2 + $0x60] sm:$0xff]
      %v377 = vld [vmem:[#allocation2 + $0x68] sm:$0xff]
      %v378 = vld [vmem:[#allocation2 + $0x78] sm:$0xff]
      %v379 = vld [vmem:[#allocation2 + $0x80] sm:$0xff]
      %v380 = vld [vmem:[#allocation2 + $0x90] sm:$0xff]
      %v381 = vld [vmem:[#allocation2 + $0x98] sm:$0xff]
      %v382 = vld [vmem:[#allocation2 + $0xa8] sm:$0xff]
      %v383 = vld [vmem:[#allocation2 + $0xb0] sm:$0xff]
      %v384 = vld [vmem:[#allocation2 + $0xc0] sm:$0xff]
      %v385 = vld [vmem:[#allocation2 + $0xc8] sm:$0xff]
      %v386 = vld [vmem:[#allocation2 + $0xd8] sm:$0xff]
      %v387 = vld [vmem:[#allocation2 + $0xe0] sm:$0xff]
      %v388 = vld [vmem:[#allocation2 + $0xf0] sm:$0xff]
      %v389 = vld [vmem:[#allocation2 + $0xf8] sm:$0xff]
      %v390 = vld [vmem:[#allocation2 + $0x108] sm:$0xff]
      %v391 = vld [vmem:[#allocation2 + $0x110] sm:$0xff]
      %v392 = vld [vmem:[#allocation2 + $0x120] sm:$0xff]
      %v393 = vld [vmem:[#allocation2 + $0x128] sm:$0xff]
      %v394 = vld [vmem:[#allocation2 + $0x138] sm:$0xff]
      %v395 = vld [vmem:[#allocation2 + $0x140] sm:$0xff]
      %v396 = vld [vmem:[#allocation2 + $0x150] sm:$0xff]
      %v397 = vld [vmem:[#allocation2 + $0x158] sm:$0xff]
      %v398 = vld [vmem:[#allocation2 + $0x168] sm:$0xff]
      %v399 = vld [vmem:[#allocation2 + $0x170] sm:$0xff]
      %400 = vst.msk [vmem:[#allocation3] sm:$0xff] %vm222, %v368
      %401 = vst.msk [vmem:[#allocation3 + $0x8] sm:$0xff] %vm222, %v369
      %402 = vst.msk [vmem:[#allocation3 + $0x10] sm:$0xff] %vm222, %v370
      %403 = vst.msk [vmem:[#allocation3 + $0x18] sm:$0xff] %vm222, %v371
      %404 = vst.msk [vmem:[#allocation3 + $0x20] sm:$0xff] %vm222, %v372
      %405 = vst.msk [vmem:[#allocation3 + $0x28] sm:$0xff] %vm222, %v373
      %406 = vst.msk [vmem:[#allocation3 + $0x30] sm:$0xff] %vm222, %v374
      %407 = vst.msk [vmem:[#allocation3 + $0x38] sm:$0xff] %vm222, %v375
      %408 = vst.msk [vmem:[#allocation3 + $0x40] sm:$0xff] %vm222, %v376
      %409 = vst.msk [vmem:[#allocation3 + $0x48] sm:$0xff] %vm222, %v377
      %410 = vst.msk [vmem:[#allocation3 + $0x50] sm:$0xff] %vm222, %v378
      %411 = vst.msk [vmem:[#allocation3 + $0x58] sm:$0xff] %vm222, %v379
      %412 = vst.msk [vmem:[#allocation3 + $0x60] sm:$0xff] %vm222, %v380
      %413 = vst.msk [vmem:[#allocation3 + $0x68] sm:$0xff] %vm222, %v381
      %414 = vst.msk [vmem:[#allocation3 + $0x70] sm:$0xff] %vm222, %v382
      %415 = vst.msk [vmem:[#allocation3 + $0x78] sm:$0xff] %vm222, %v383
      %416 = vst.msk [vmem:[#allocation3 + $0x80] sm:$0xff] %vm222, %v384
      %417 = vst.msk [vmem:[#allocation3 + $0x88] sm:$0xff] %vm222, %v385
      %418 = vst.msk [vmem:[#allocation3 + $0x90] sm:$0xff] %vm222, %v386
      %419 = vst.msk [vmem:[#allocation3 + $0x98] sm:$0xff] %vm222, %v387
      %420 = vst.msk [vmem:[#allocation3 + $0xa0] sm:$0xff] %vm222, %v388
      %421 = vst.msk [vmem:[#allocation3 + $0xa8] sm:$0xff] %vm222, %v389
      %422 = vst.msk [vmem:[#allocation3 + $0xb0] sm:$0xff] %vm222, %v390
      %423 = vst.msk [vmem:[#allocation3 + $0xb8] sm:$0xff] %vm222, %v391
      %424 = vst.msk [vmem:[#allocation3 + $0xc0] sm:$0xff] %vm222, %v392
      %425 = vst.msk [vmem:[#allocation3 + $0xc8] sm:$0xff] %vm222, %v393
      %426 = vst.msk [vmem:[#allocation3 + $0xd0] sm:$0xff] %vm222, %v394
      %427 = vst.msk [vmem:[#allocation3 + $0xd8] sm:$0xff] %vm222, %v395
      %428 = vst.msk [vmem:[#allocation3 + $0xe0] sm:$0xff] %vm222, %v396
      %429 = vst.msk [vmem:[#allocation3 + $0xe8] sm:$0xff] %vm222, %v397
      %430 = vst.msk [vmem:[#allocation3 + $0xf0] sm:$0xff] %vm222, %v398
      %431 = vst.msk [vmem:[#allocation3 + $0xf8] sm:$0xff] %vm222, %v399
      %v432 = vld [vmem:[#allocation2 + $0x1] sm:$0xff]
      %v433 = vld [vmem:[#allocation2 + $0x9] sm:$0xff]
      %v434 = vld [vmem:[#allocation2 + $0x19] sm:$0xff]
      %v435 = vld [vmem:[#allocation2 + $0x21] sm:$0xff]
      %v436 = vld [vmem:[#allocation2 + $0x31] sm:$0xff]
      %v437 = vld [vmem:[#allocation2 + $0x39] sm:$0xff]
      %v438 = vld [vmem:[#allocation2 + $0x49] sm:$0xff]
      %v439 = vld [vmem:[#allocation2 + $0x51] sm:$0xff]
      %v440 = vld [vmem:[#allocation2 + $0x61] sm:$0xff]
      %v441 = vld [vmem:[#allocation2 + $0x69] sm:$0xff]
      %v442 = vld [vmem:[#allocation2 + $0x79] sm:$0xff]
      %v443 = vld [vmem:[#allocation2 + $0x81] sm:$0xff]
      %v444 = vld [vmem:[#allocation2 + $0x91] sm:$0xff]
      %v445 = vld [vmem:[#allocation2 + $0x99] sm:$0xff]
      %v446 = vld [vmem:[#allocation2 + $0xa9] sm:$0xff]
      %v447 = vld [vmem:[#allocation2 + $0xb1] sm:$0xff]
      %v448 = vld [vmem:[#allocation2 + $0xc1] sm:$0xff]
      %v449 = vld [vmem:[#allocation2 + $0xc9] sm:$0xff]
      %v450 = vld [vmem:[#allocation2 + $0xd9] sm:$0xff]
      %v451 = vld [vmem:[#allocation2 + $0xe1] sm:$0xff]
      %v452 = vld [vmem:[#allocation2 + $0xf1] sm:$0xff]
      %v453 = vld [vmem:[#allocation2 + $0xf9] sm:$0xff]
      %v454 = vld [vmem:[#allocation2 + $0x109] sm:$0xff]
      %v455 = vld [vmem:[#allocation2 + $0x111] sm:$0xff]
      %v456 = vld [vmem:[#allocation2 + $0x121] sm:$0xff]
      %v457 = vld [vmem:[#allocation2 + $0x129] sm:$0xff]
      %v458 = vld [vmem:[#allocation2 + $0x139] sm:$0xff]
      %v459 = vld [vmem:[#allocation2 + $0x141] sm:$0xff]
      %v460 = vld [vmem:[#allocation2 + $0x151] sm:$0xff]
      %v461 = vld [vmem:[#allocation2 + $0x159] sm:$0xff]
      %v462 = vld [vmem:[#allocation2 + $0x169] sm:$0xff]
      %v463 = vld [vmem:[#allocation2 + $0x171] sm:$0xff]
      %496 = vrot.lane.b32.xlu0 %v432, 4
      %v497 = vpop.permute.xlu0 %496
      %498 = vrot.lane.b32.xlu0 %v433, 4
      %v499 = vpop.permute.xlu0 %498
      %500 = vrot.lane.b32.xlu0 %v434, 4
      %v501 = vpop.permute.xlu0 %500
      %502 = vrot.lane.b32.xlu0 %v435, 4
      %v503 = vpop.permute.xlu0 %502
      %504 = vrot.lane.b32.xlu0 %v436, 4
      %v505 = vpop.permute.xlu0 %504
      %506 = vrot.lane.b32.xlu0 %v437, 4
      %v507 = vpop.permute.xlu0 %506
      %508 = vrot.lane.b32.xlu0 %v438, 4
      %v509 = vpop.permute.xlu0 %508
      %510 = vrot.lane.b32.xlu0 %v439, 4
      %v511 = vpop.permute.xlu0 %510
      %512 = vrot.lane.b32.xlu0 %v440, 4
      %v513 = vpop.permute.xlu0 %512
      %514 = vrot.lane.b32.xlu0 %v441, 4
      %v515 = vpop.permute.xlu0 %514
      %516 = vrot.lane.b32.xlu0 %v442, 4
      %v517 = vpop.permute.xlu0 %516
      %518 = vrot.lane.b32.xlu0 %v443, 4
      %v519 = vpop.permute.xlu0 %518
      %520 = vrot.lane.b32.xlu0 %v444, 4
      %v521 = vpop.permute.xlu0 %520
      %522 = vrot.lane.b32.xlu0 %v445, 4
      %v523 = vpop.permute.xlu0 %522
      %524 = vrot.lane.b32.xlu0 %v446, 4
      %v525 = vpop.permute.xlu0 %524
      %526 = vrot.lane.b32.xlu0 %v447, 4
      %v527 = vpop.permute.xlu0 %526
      %528 = vrot.lane.b32.xlu0 %v448, 4
      %v529 = vpop.permute.xlu0 %528
      %530 = vrot.lane.b32.xlu0 %v449, 4
      %v531 = vpop.permute.xlu0 %530
      %532 = vrot.lane.b32.xlu0 %v450, 4
      %v533 = vpop.permute.xlu0 %532
      %534 = vrot.lane.b32.xlu0 %v451, 4
      %v535 = vpop.permute.xlu0 %534
      %536 = vrot.lane.b32.xlu0 %v452, 4
      %v537 = vpop.permute.xlu0 %536
      %538 = vrot.lane.b32.xlu0 %v453, 4
      %v539 = vpop.permute.xlu0 %538
      %540 = vrot.lane.b32.xlu0 %v454, 4
      %v541 = vpop.permute.xlu0 %540
      %542 = vrot.lane.b32.xlu0 %v455, 4
      %v543 = vpop.permute.xlu0 %542
      %544 = vrot.lane.b32.xlu0 %v456, 4
      %v545 = vpop.permute.xlu0 %544
      %546 = vrot.lane.b32.xlu0 %v457, 4
      %v547 = vpop.permute.xlu0 %546
      %548 = vrot.lane.b32.xlu0 %v458, 4
      %v549 = vpop.permute.xlu0 %548
      %550 = vrot.lane.b32.xlu0 %v459, 4
      %v551 = vpop.permute.xlu0 %550
      %552 = vrot.lane.b32.xlu0 %v460, 4
      %v553 = vpop.permute.xlu0 %552
      %554 = vrot.lane.b32.xlu0 %v461, 4
      %v555 = vpop.permute.xlu0 %554
      %556 = vrot.lane.b32.xlu0 %v462, 4
      %v557 = vpop.permute.xlu0 %556
      %558 = vrot.lane.b32.xlu0 %v463, 4
      %v559 = vpop.permute.xlu0 %558
      %vm592 = vcmask 64544
      %593 = vst.msk [vmem:[#allocation3] sm:$0xff] %vm592, %v497
      %594 = vst.msk [vmem:[#allocation3 + $0x8] sm:$0xff] %vm592, %v499
      %595 = vst.msk [vmem:[#allocation3 + $0x10] sm:$0xff] %vm592, %v501
      %596 = vst.msk [vmem:[#allocation3 + $0x18] sm:$0xff] %vm592, %v503
      %597 = vst.msk [vmem:[#allocation3 + $0x20] sm:$0xff] %vm592, %v505
      %598 = vst.msk [vmem:[#allocation3 + $0x28] sm:$0xff] %vm592, %v507
      %599 = vst.msk [vmem:[#allocation3 + $0x30] sm:$0xff] %vm592, %v509
      %600 = vst.msk [vmem:[#allocation3 + $0x38] sm:$0xff] %vm592, %v511
      %601 = vst.msk [vmem:[#allocation3 + $0x40] sm:$0xff] %vm592, %v513
      %602 = vst.msk [vmem:[#allocation3 + $0x48] sm:$0xff] %vm592, %v515
      %603 = vst.msk [vmem:[#allocation3 + $0x50] sm:$0xff] %vm592, %v517
      %604 = vst.msk [vmem:[#allocation3 + $0x58] sm:$0xff] %vm592, %v519
      %605 = vst.msk [vmem:[#allocation3 + $0x60] sm:$0xff] %vm592, %v521
      %606 = vst.msk [vmem:[#allocation3 + $0x68] sm:$0xff] %vm592, %v523
      %607 = vst.msk [vmem:[#allocation3 + $0x70] sm:$0xff] %vm592, %v525
      %608 = vst.msk [vmem:[#allocation3 + $0x78] sm:$0xff] %vm592, %v527
      %609 = vst.msk [vmem:[#allocation3 + $0x80] sm:$0xff] %vm592, %v529
      %610 = vst.msk [vmem:[#allocation3 + $0x88] sm:$0xff] %vm592, %v531
      %611 = vst.msk [vmem:[#allocation3 + $0x90] sm:$0xff] %vm592, %v533
      %612 = vst.msk [vmem:[#allocation3 + $0x98] sm:$0xff] %vm592, %v535
      %613 = vst.msk [vmem:[#allocation3 + $0xa0] sm:$0xff] %vm592, %v537
      %614 = vst.msk [vmem:[#allocation3 + $0xa8] sm:$0xff] %vm592, %v539
      %615 = vst.msk [vmem:[#allocation3 + $0xb0] sm:$0xff] %vm592, %v541
      %616 = vst.msk [vmem:[#allocation3 + $0xb8] sm:$0xff] %vm592, %v543
      %617 = vst.msk [vmem:[#allocation3 + $0xc0] sm:$0xff] %vm592, %v545
      %618 = vst.msk [vmem:[#allocation3 + $0xc8] sm:$0xff] %vm592, %v547
      %619 = vst.msk [vmem:[#allocation3 + $0xd0] sm:$0xff] %vm592, %v549
      %620 = vst.msk [vmem:[#allocation3 + $0xd8] sm:$0xff] %vm592, %v551
      %621 = vst.msk [vmem:[#allocation3 + $0xe0] sm:$0xff] %vm592, %v553
      %622 = vst.msk [vmem:[#allocation3 + $0xe8] sm:$0xff] %vm592, %v555
      %623 = vst.msk [vmem:[#allocation3 + $0xf0] sm:$0xff] %vm592, %v557
      %624 = vst.msk [vmem:[#allocation3 + $0xf8] sm:$0xff] %vm592, %v559
      %v625 = vld [vmem:[#allocation2 + $0x2] sm:$0xff]
      %v626 = vld [vmem:[#allocation2 + $0xa] sm:$0xff]
      %v627 = vld [vmem:[#allocation2 + $0x1a] sm:$0xff]
      %v628 = vld [vmem:[#allocation2 + $0x22] sm:$0xff]
      %v629 = vld [vmem:[#allocation2 + $0x32] sm:$0xff]
      %v630 = vld [vmem:[#allocation2 + $0x3a] sm:$0xff]
      %v631 = vld [vmem:[#allocation2 + $0x4a] sm:$0xff]
      %v632 = vld [vmem:[#allocation2 + $0x52] sm:$0xff]
      %v633 = vld [vmem:[#allocation2 + $0x62] sm:$0xff]
      %v634 = vld [vmem:[#allocation2 + $0x6a] sm:$0xff]
      %v635 = vld [vmem:[#allocation2 + $0x7a] sm:$0xff]
      %v636 = vld [vmem:[#allocation2 + $0x82] sm:$0xff]
      %v637 = vld [vmem:[#allocation2 + $0x92] sm:$0xff]
      %v638 = vld [vmem:[#allocation2 + $0x9a] sm:$0xff]
      %v639 = vld [vmem:[#allocation2 + $0xaa] sm:$0xff]
      %v640 = vld [vmem:[#allocation2 + $0xb2] sm:$0xff]
      %v641 = vld [vmem:[#allocation2 + $0xc2] sm:$0xff]
      %v642 = vld [vmem:[#allocation2 + $0xca] sm:$0xff]
      %v643 = vld [vmem:[#allocation2 + $0xda] sm:$0xff]
      %v644 = vld [vmem:[#allocation2 + $0xe2] sm:$0xff]
      %v645 = vld [vmem:[#allocation2 + $0xf2] sm:$0xff]
      %v646 = vld [vmem:[#allocation2 + $0xfa] sm:$0xff]
      %v647 = vld [vmem:[#allocation2 + $0x10a] sm:$0xff]
      %v648 = vld [vmem:[#allocation2 + $0x112] sm:$0xff]
      %v649 = vld [vmem:[#allocation2 + $0x122] sm:$0xff]
      %v650 = vld [vmem:[#allocation2 + $0x12a] sm:$0xff]
      %v651 = vld [vmem:[#allocation2 + $0x13a] sm:$0xff]
      %v652 = vld [vmem:[#allocation2 + $0x142] sm:$0xff]
      %v653 = vld [vmem:[#allocation2 + $0x152] sm:$0xff]
      %v654 = vld [vmem:[#allocation2 + $0x15a] sm:$0xff]
      %v655 = vld [vmem:[#allocation2 + $0x16a] sm:$0xff]
      %v656 = vld [vmem:[#allocation2 + $0x172] sm:$0xff]
      %689 = vrot.lane.b32.xlu0 %v625, 8
      %v690 = vpop.permute.xlu0 %689
      %691 = vrot.lane.b32.xlu0 %v626, 8
      %v692 = vpop.permute.xlu0 %691
      %693 = vrot.lane.b32.xlu0 %v627, 8
      %v694 = vpop.permute.xlu0 %693
      %695 = vrot.lane.b32.xlu0 %v628, 8
      %v696 = vpop.permute.xlu0 %695
      %697 = vrot.lane.b32.xlu0 %v629, 8
      %v698 = vpop.permute.xlu0 %697
      %699 = vrot.lane.b32.xlu0 %v630, 8
      %v700 = vpop.permute.xlu0 %699
      %701 = vrot.lane.b32.xlu0 %v631, 8
      %v702 = vpop.permute.xlu0 %701
      %703 = vrot.lane.b32.xlu0 %v632, 8
      %v704 = vpop.permute.xlu0 %703
      %705 = vrot.lane.b32.xlu0 %v633, 8
      %v706 = vpop.permute.xlu0 %705
      %707 = vrot.lane.b32.xlu0 %v634, 8
      %v708 = vpop.permute.xlu0 %707
      %709 = vrot.lane.b32.xlu0 %v635, 8
      %v710 = vpop.permute.xlu0 %709
      %711 = vrot.lane.b32.xlu0 %v636, 8
      %v712 = vpop.permute.xlu0 %711
      %713 = vrot.lane.b32.xlu0 %v637, 8
      %v714 = vpop.permute.xlu0 %713
      %715 = vrot.lane.b32.xlu0 %v638, 8
      %v716 = vpop.permute.xlu0 %715
      %717 = vrot.lane.b32.xlu0 %v639, 8
      %v718 = vpop.permute.xlu0 %717
      %719 = vrot.lane.b32.xlu0 %v640, 8
      %v720 = vpop.permute.xlu0 %719
      %721 = vrot.lane.b32.xlu0 %v641, 8
      %v722 = vpop.permute.xlu0 %721
      %723 = vrot.lane.b32.xlu0 %v642, 8
      %v724 = vpop.permute.xlu0 %723
      %725 = vrot.lane.b32.xlu0 %v643, 8
      %v726 = vpop.permute.xlu0 %725
      %727 = vrot.lane.b32.xlu0 %v644, 8
      %v728 = vpop.permute.xlu0 %727
      %729 = vrot.lane.b32.xlu0 %v645, 8
      %v730 = vpop.permute.xlu0 %729
      %731 = vrot.lane.b32.xlu0 %v646, 8
      %v732 = vpop.permute.xlu0 %731
      %733 = vrot.lane.b32.xlu0 %v647, 8
      %v734 = vpop.permute.xlu0 %733
      %735 = vrot.lane.b32.xlu0 %v648, 8
      %v736 = vpop.permute.xlu0 %735
      %737 = vrot.lane.b32.xlu0 %v649, 8
      %v738 = vpop.permute.xlu0 %737
      %739 = vrot.lane.b32.xlu0 %v650, 8
      %v740 = vpop.permute.xlu0 %739
      %741 = vrot.lane.b32.xlu0 %v651, 8
      %v742 = vpop.permute.xlu0 %741
      %743 = vrot.lane.b32.xlu0 %v652, 8
      %v744 = vpop.permute.xlu0 %743
      %745 = vrot.lane.b32.xlu0 %v653, 8
      %v746 = vpop.permute.xlu0 %745
      %747 = vrot.lane.b32.xlu0 %v654, 8
      %v748 = vpop.permute.xlu0 %747
      %749 = vrot.lane.b32.xlu0 %v655, 8
      %v750 = vpop.permute.xlu0 %749
      %751 = vrot.lane.b32.xlu0 %v656, 8
      %v752 = vpop.permute.xlu0 %751
      %vm785 = vcmask 97344
      %786 = vst.msk [vmem:[#allocation3] sm:$0xff] %vm785, %v690
      %787 = vst.msk [vmem:[#allocation3 + $0x8] sm:$0xff] %vm785, %v692
      %788 = vst.msk [vmem:[#allocation3 + $0x10] sm:$0xff] %vm785, %v694
      %789 = vst.msk [vmem:[#allocation3 + $0x18] sm:$0xff] %vm785, %v696
      %790 = vst.msk [vmem:[#allocation3 + $0x20] sm:$0xff] %vm785, %v698
      %791 = vst.msk [vmem:[#allocation3 + $0x28] sm:$0xff] %vm785, %v700
      %792 = vst.msk [vmem:[#allocation3 + $0x30] sm:$0xff] %vm785, %v702
      %793 = vst.msk [vmem:[#allocation3 + $0x38] sm:$0xff] %vm785, %v704
      %794 = vst.msk [vmem:[#allocation3 + $0x40] sm:$0xff] %vm785, %v706
      %795 = vst.msk [vmem:[#allocation3 + $0x48] sm:$0xff] %vm785, %v708
      %796 = vst.msk [vmem:[#allocation3 + $0x50] sm:$0xff] %vm785, %v710
      %797 = vst.msk [vmem:[#allocation3 + $0x58] sm:$0xff] %vm785, %v712
      %798 = vst.msk [vmem:[#allocation3 + $0x60] sm:$0xff] %vm785, %v714
      %799 = vst.msk [vmem:[#allocation3 + $0x68] sm:$0xff] %vm785, %v716
      %800 = vst.msk [vmem:[#allocation3 + $0x70] sm:$0xff] %vm785, %v718
      %801 = vst.msk [vmem:[#allocation3 + $0x78] sm:$0xff] %vm785, %v720
      %802 = vst.msk [vmem:[#allocation3 + $0x80] sm:$0xff] %vm785, %v722
      %803 = vst.msk [vmem:[#allocation3 + $0x88] sm:$0xff] %vm785, %v724
      %804 = vst.msk [vmem:[#allocation3 + $0x90] sm:$0xff] %vm785, %v726
      %805 = vst.msk [vmem:[#allocation3 + $0x98] sm:$0xff] %vm785, %v728
      %806 = vst.msk [vmem:[#allocation3 + $0xa0] sm:$0xff] %vm785, %v730
      %807 = vst.msk [vmem:[#allocation3 + $0xa8] sm:$0xff] %vm785, %v732
      %808 = vst.msk [vmem:[#allocation3 + $0xb0] sm:$0xff] %vm785, %v734
      %809 = vst.msk [vmem:[#allocation3 + $0xb8] sm:$0xff] %vm785, %v736
      %810 = vst.msk [vmem:[#allocation3 + $0xc0] sm:$0xff] %vm785, %v738
      %811 = vst.msk [vmem:[#allocation3 + $0xc8] sm:$0xff] %vm785, %v740
      %812 = vst.msk [vmem:[#allocation3 + $0xd0] sm:$0xff] %vm785, %v742
      %813 = vst.msk [vmem:[#allocation3 + $0xd8] sm:$0xff] %vm785, %v744
      %814 = vst.msk [vmem:[#allocation3 + $0xe0] sm:$0xff] %vm785, %v746
      %815 = vst.msk [vmem:[#allocation3 + $0xe8] sm:$0xff] %vm785, %v748
      %816 = vst.msk [vmem:[#allocation3 + $0xf0] sm:$0xff] %vm785, %v750
      %817 = vst.msk [vmem:[#allocation3 + $0xf8] sm:$0xff] %vm785, %v752
      %v818 = vld [vmem:[%s312] sm:$0xff]
      %v819 = vld [vmem:[%s312 + $0x8] sm:$0xff]
      %v820 = vld [vmem:[%s312 + $0x18] sm:$0xff]
      %v821 = vld [vmem:[%s312 + $0x20] sm:$0xff]
      %v822 = vld [vmem:[%s312 + $0x30] sm:$0xff]
      %v823 = vld [vmem:[%s312 + $0x38] sm:$0xff]
      %v824 = vld [vmem:[%s312 + $0x48] sm:$0xff]
      %v825 = vld [vmem:[%s312 + $0x50] sm:$0xff]
      %v826 = vld [vmem:[%s312 + $0x60] sm:$0xff]
      %v827 = vld [vmem:[%s312 + $0x68] sm:$0xff]
      %v828 = vld [vmem:[%s312 + $0x78] sm:$0xff]
      %v829 = vld [vmem:[%s312 + $0x80] sm:$0xff]
      %v830 = vld [vmem:[%s312 + $0x90] sm:$0xff]
      %v831 = vld [vmem:[%s312 + $0x98] sm:$0xff]
      %v832 = vld [vmem:[%s312 + $0xa8] sm:$0xff]
      %v833 = vld [vmem:[%s312 + $0xb0] sm:$0xff]
      %v834 = vld [vmem:[%s312 + $0xc0] sm:$0xff]
      %v835 = vld [vmem:[%s312 + $0xc8] sm:$0xff]
      %v836 = vld [vmem:[%s312 + $0xd8] sm:$0xff]
      %v837 = vld [vmem:[%s312 + $0xe0] sm:$0xff]
      %v838 = vld [vmem:[%s312 + $0xf0] sm:$0xff]
      %v839 = vld [vmem:[%s312 + $0xf8] sm:$0xff]
      %v840 = vld [vmem:[%s312 + $0x108] sm:$0xff]
      %v841 = vld [vmem:[%s312 + $0x110] sm:$0xff]
      %v842 = vld [vmem:[%s312 + $0x120] sm:$0xff]
      %v843 = vld [vmem:[%s312 + $0x128] sm:$0xff]
      %v844 = vld [vmem:[%s312 + $0x138] sm:$0xff]
      %v845 = vld [vmem:[%s312 + $0x140] sm:$0xff]
      %v846 = vld [vmem:[%s312 + $0x150] sm:$0xff]
      %v847 = vld [vmem:[%s312 + $0x158] sm:$0xff]
      %v848 = vld [vmem:[%s312 + $0x168] sm:$0xff]
      %v849 = vld [vmem:[%s312 + $0x170] sm:$0xff]
      %882 = vrot.lane.b32.xlu0 %v818, 12
      %v883 = vpop.permute.xlu0 %882
      %884 = vrot.lane.b32.xlu0 %v819, 12
      %v885 = vpop.permute.xlu0 %884
      %886 = vrot.lane.b32.xlu0 %v820, 12
      %v887 = vpop.permute.xlu0 %886
      %888 = vrot.lane.b32.xlu0 %v821, 12
      %v889 = vpop.permute.xlu0 %888
      %890 = vrot.lane.b32.xlu0 %v822, 12
      %v891 = vpop.permute.xlu0 %890
      %892 = vrot.lane.b32.xlu0 %v823, 12
      %v893 = vpop.permute.xlu0 %892
      %894 = vrot.lane.b32.xlu0 %v824, 12
      %v895 = vpop.permute.xlu0 %894
      %896 = vrot.lane.b32.xlu0 %v825, 12
      %v897 = vpop.permute.xlu0 %896
      %898 = vrot.lane.b32.xlu0 %v826, 12
      %v899 = vpop.permute.xlu0 %898
      %900 = vrot.lane.b32.xlu0 %v827, 12
      %v901 = vpop.permute.xlu0 %900
      %902 = vrot.lane.b32.xlu0 %v828, 12
      %v903 = vpop.permute.xlu0 %902
      %904 = vrot.lane.b32.xlu0 %v829, 12
      %v905 = vpop.permute.xlu0 %904
      %906 = vrot.lane.b32.xlu0 %v830, 12
      %v907 = vpop.permute.xlu0 %906
      %908 = vrot.lane.b32.xlu0 %v831, 12
      %v909 = vpop.permute.xlu0 %908
      %910 = vrot.lane.b32.xlu0 %v832, 12
      %v911 = vpop.permute.xlu0 %910
      %912 = vrot.lane.b32.xlu0 %v833, 12
      %v913 = vpop.permute.xlu0 %912
      %914 = vrot.lane.b32.xlu0 %v834, 12
      %v915 = vpop.permute.xlu0 %914
      %916 = vrot.lane.b32.xlu0 %v835, 12
      %v917 = vpop.permute.xlu0 %916
      %918 = vrot.lane.b32.xlu0 %v836, 12
      %v919 = vpop.permute.xlu0 %918
      %920 = vrot.lane.b32.xlu0 %v837, 12
      %v921 = vpop.permute.xlu0 %920
      %922 = vrot.lane.b32.xlu0 %v838, 12
      %v923 = vpop.permute.xlu0 %922
      %924 = vrot.lane.b32.xlu0 %v839, 12
      %v925 = vpop.permute.xlu0 %924
      %926 = vrot.lane.b32.xlu0 %v840, 12
      %v927 = vpop.permute.xlu0 %926
      %928 = vrot.lane.b32.xlu0 %v841, 12
      %v929 = vpop.permute.xlu0 %928
      %930 = vrot.lane.b32.xlu0 %v842, 12
      %v931 = vpop.permute.xlu0 %930
      %932 = vrot.lane.b32.xlu0 %v843, 12
      %v933 = vpop.permute.xlu0 %932
      %934 = vrot.lane.b32.xlu0 %v844, 12
      %v935 = vpop.permute.xlu0 %934
      %936 = vrot.lane.b32.xlu0 %v845, 12
      %v937 = vpop.permute.xlu0 %936
      %938 = vrot.lane.b32.xlu0 %v846, 12
      %v939 = vpop.permute.xlu0 %938
      %940 = vrot.lane.b32.xlu0 %v847, 12
      %v941 = vpop.permute.xlu0 %940
      %942 = vrot.lane.b32.xlu0 %v848, 12
      %v943 = vpop.permute.xlu0 %942
      %944 = vrot.lane.b32.xlu0 %v849, 12
      %v945 = vpop.permute.xlu0 %944
      %vm978 = vcmask 130144
      %979 = vst.msk [vmem:[#allocation3] sm:$0xff] %vm978, %v883
      %980 = vst.msk [vmem:[#allocation3 + $0x8] sm:$0xff] %vm978, %v885
      %981 = vst.msk [vmem:[#allocation3 + $0x10] sm:$0xff] %vm978, %v887
      %982 = vst.msk [vmem:[#allocation3 + $0x18] sm:$0xff] %vm978, %v889
      %983 = vst.msk [vmem:[#allocation3 + $0x20] sm:$0xff] %vm978, %v891
      %984 = vst.msk [vmem:[#allocation3 + $0x28] sm:$0xff] %vm978, %v893
      %985 = vst.msk [vmem:[#allocation3 + $0x30] sm:$0xff] %vm978, %v895
      %986 = vst.msk [vmem:[#allocation3 + $0x38] sm:$0xff] %vm978, %v897
      %987 = vst.msk [vmem:[#allocation3 + $0x40] sm:$0xff] %vm978, %v899
      %988 = vst.msk [vmem:[#allocation3 + $0x48] sm:$0xff] %vm978, %v901
      %989 = vst.msk [vmem:[#allocation3 + $0x50] sm:$0xff] %vm978, %v903
      %990 = vst.msk [vmem:[#allocation3 + $0x58] sm:$0xff] %vm978, %v905
      %991 = vst.msk [vmem:[#allocation3 + $0x60] sm:$0xff] %vm978, %v907
      %992 = vst.msk [vmem:[#allocation3 + $0x68] sm:$0xff] %vm978, %v909
      %993 = vst.msk [vmem:[#allocation3 + $0x70] sm:$0xff] %vm978, %v911
      %994 = vst.msk [vmem:[#allocation3 + $0x78] sm:$0xff] %vm978, %v913
      %995 = vst.msk [vmem:[#allocation3 + $0x80] sm:$0xff] %vm978, %v915
      %996 = vst.msk [vmem:[#allocation3 + $0x88] sm:$0xff] %vm978, %v917
      %997 = vst.msk [vmem:[#allocation3 + $0x90] sm:$0xff] %vm978, %v919
      %998 = vst.msk [vmem:[#allocation3 + $0x98] sm:$0xff] %vm978, %v921
      %999 = vst.msk [vmem:[#allocation3 + $0xa0] sm:$0xff] %vm978, %v923
      %1000 = vst.msk [vmem:[#allocation3 + $0xa8] sm:$0xff] %vm978, %v925
      %1001 = vst.msk [vmem:[#allocation3 + $0xb0] sm:$0xff] %vm978, %v927
      %1002 = vst.msk [vmem:[#allocation3 + $0xb8] sm:$0xff] %vm978, %v929
      %1003 = vst.msk [vmem:[#allocation3 + $0xc0] sm:$0xff] %vm978, %v931
      %1004 = vst.msk [vmem:[#allocation3 + $0xc8] sm:$0xff] %vm978, %v933
      %1005 = vst.msk [vmem:[#allocation3 + $0xd0] sm:$0xff] %vm978, %v935
      %1006 = vst.msk [vmem:[#allocation3 + $0xd8] sm:$0xff] %vm978, %v937
      %1007 = vst.msk [vmem:[#allocation3 + $0xe0] sm:$0xff] %vm978, %v939
      %1008 = vst.msk [vmem:[#allocation3 + $0xe8] sm:$0xff] %vm978, %v941
      %1009 = vst.msk [vmem:[#allocation3 + $0xf0] sm:$0xff] %vm978, %v943
      %1010 = vst.msk [vmem:[#allocation3 + $0xf8] sm:$0xff] %vm978, %v945
      %v1011 = vld [vmem:[%s312 + $0x1] sm:$0xff]
      %v1012 = vld [vmem:[%s312 + $0x9] sm:$0xff]
      %v1013 = vld [vmem:[%s312 + $0x19] sm:$0xff]
      %v1014 = vld [vmem:[%s312 + $0x21] sm:$0xff]
      %v1015 = vld [vmem:[%s312 + $0x31] sm:$0xff]
      %v1016 = vld [vmem:[%s312 + $0x39] sm:$0xff]
      %v1017 = vld [vmem:[%s312 + $0x49] sm:$0xff]
      %v1018 = vld [vmem:[%s312 + $0x51] sm:$0xff]
      %v1019 = vld [vmem:[%s312 + $0x61] sm:$0xff]
      %v1020 = vld [vmem:[%s312 + $0x69] sm:$0xff]
      %v1021 = vld [vmem:[%s312 + $0x79] sm:$0xff]
      %v1022 = vld [vmem:[%s312 + $0x81] sm:$0xff]
      %v1023 = vld [vmem:[%s312 + $0x91] sm:$0xff]
      %v1024 = vld [vmem:[%s312 + $0x99] sm:$0xff]
      %v1025 = vld [vmem:[%s312 + $0xa9] sm:$0xff]
      %v1026 = vld [vmem:[%s312 + $0xb1] sm:$0xff]
      %v1027 = vld [vmem:[%s312 + $0xc1] sm:$0xff]
      %v1028 = vld [vmem:[%s312 + $0xc9] sm:$0xff]
      %v1029 = vld [vmem:[%s312 + $0xd9] sm:$0xff]
      %v1030 = vld [vmem:[%s312 + $0xe1] sm:$0xff]
      %v1031 = vld [vmem:[%s312 + $0xf1] sm:$0xff]
      %v1032 = vld [vmem:[%s312 + $0xf9] sm:$0xff]
      %v1033 = vld [vmem:[%s312 + $0x109] sm:$0xff]
      %v1034 = vld [vmem:[%s312 + $0x111] sm:$0xff]
      %v1035 = vld [vmem:[%s312 + $0x121] sm:$0xff]
      %v1036 = vld [vmem:[%s312 + $0x129] sm:$0xff]
      %v1037 = vld [vmem:[%s312 + $0x139] sm:$0xff]
      %v1038 = vld [vmem:[%s312 + $0x141] sm:$0xff]
      %v1039 = vld [vmem:[%s312 + $0x151] sm:$0xff]
      %v1040 = vld [vmem:[%s312 + $0x159] sm:$0xff]
      %v1041 = vld [vmem:[%s312 + $0x169] sm:$0xff]
      %v1042 = vld [vmem:[%s312 + $0x171] sm:$0xff]
      %1075 = vrot.lane.b32.xlu0 %v1011, 16
      %v1076 = vpop.permute.xlu0 %1075
      %1077 = vrot.lane.b32.xlu0 %v1012, 16
      %v1078 = vpop.permute.xlu0 %1077
      %1079 = vrot.lane.b32.xlu0 %v1013, 16
      %v1080 = vpop.permute.xlu0 %1079
      %1081 = vrot.lane.b32.xlu0 %v1014, 16
      %v1082 = vpop.permute.xlu0 %1081
      %1083 = vrot.lane.b32.xlu0 %v1015, 16
      %v1084 = vpop.permute.xlu0 %1083
      %1085 = vrot.lane.b32.xlu0 %v1016, 16
      %v1086 = vpop.permute.xlu0 %1085
      %1087 = vrot.lane.b32.xlu0 %v1017, 16
      %v1088 = vpop.permute.xlu0 %1087
      %1089 = vrot.lane.b32.xlu0 %v1018, 16
      %v1090 = vpop.permute.xlu0 %1089
      %1091 = vrot.lane.b32.xlu0 %v1019, 16
      %v1092 = vpop.permute.xlu0 %1091
      %1093 = vrot.lane.b32.xlu0 %v1020, 16
      %v1094 = vpop.permute.xlu0 %1093
      %1095 = vrot.lane.b32.xlu0 %v1021, 16
      %v1096 = vpop.permute.xlu0 %1095
      %1097 = vrot.lane.b32.xlu0 %v1022, 16
      %v1098 = vpop.permute.xlu0 %1097
      %1099 = vrot.lane.b32.xlu0 %v1023, 16
      %v1100 = vpop.permute.xlu0 %1099
      %1101 = vrot.lane.b32.xlu0 %v1024, 16
      %v1102 = vpop.permute.xlu0 %1101
      %1103 = vrot.lane.b32.xlu0 %v1025, 16
      %v1104 = vpop.permute.xlu0 %1103
      %1105 = vrot.lane.b32.xlu0 %v1026, 16
      %v1106 = vpop.permute.xlu0 %1105
      %1107 = vrot.lane.b32.xlu0 %v1027, 16
      %v1108 = vpop.permute.xlu0 %1107
      %1109 = vrot.lane.b32.xlu0 %v1028, 16
      %v1110 = vpop.permute.xlu0 %1109
      %1111 = vrot.lane.b32.xlu0 %v1029, 16
      %v1112 = vpop.permute.xlu0 %1111
      %1113 = vrot.lane.b32.xlu0 %v1030, 16
      %v1114 = vpop.permute.xlu0 %1113
      %1115 = vrot.lane.b32.xlu0 %v1031, 16
      %v1116 = vpop.permute.xlu0 %1115
      %1117 = vrot.lane.b32.xlu0 %v1032, 16
      %v1118 = vpop.permute.xlu0 %1117
      %1119 = vrot.lane.b32.xlu0 %v1033, 16
      %v1120 = vpop.permute.xlu0 %1119
      %1121 = vrot.lane.b32.xlu0 %v1034, 16
      %v1122 = vpop.permute.xlu0 %1121
      %1123 = vrot.lane.b32.xlu0 %v1035, 16
      %v1124 = vpop.permute.xlu0 %1123
      %1125 = vrot.lane.b32.xlu0 %v1036, 16
      %v1126 = vpop.permute.xlu0 %1125
      %1127 = vrot.lane.b32.xlu0 %v1037, 16
      %v1128 = vpop.permute.xlu0 %1127
      %1129 = vrot.lane.b32.xlu0 %v1038, 16
      %v1130 = vpop.permute.xlu0 %1129
      %1131 = vrot.lane.b32.xlu0 %v1039, 16
      %v1132 = vpop.permute.xlu0 %1131
      %1133 = vrot.lane.b32.xlu0 %v1040, 16
      %v1134 = vpop.permute.xlu0 %1133
      %1135 = vrot.lane.b32.xlu0 %v1041, 16
      %v1136 = vpop.permute.xlu0 %1135
      %1137 = vrot.lane.b32.xlu0 %v1042, 16
      %v1138 = vpop.permute.xlu0 %1137
      %vm1171 = vcmask 162944
      %1172 = vst.msk [vmem:[#allocation3] sm:$0xff] %vm1171, %v1076
      %1173 = vst.msk [vmem:[#allocation3 + $0x8] sm:$0xff] %vm1171, %v1078
      %1174 = vst.msk [vmem:[#allocation3 + $0x10] sm:$0xff] %vm1171, %v1080
      %1175 = vst.msk [vmem:[#allocation3 + $0x18] sm:$0xff] %vm1171, %v1082
      %1176 = vst.msk [vmem:[#allocation3 + $0x20] sm:$0xff] %vm1171, %v1084
      %1177 = vst.msk [vmem:[#allocation3 + $0x28] sm:$0xff] %vm1171, %v1086
      %1178 = vst.msk [vmem:[#allocation3 + $0x30] sm:$0xff] %vm1171, %v1088
      %1179 = vst.msk [vmem:[#allocation3 + $0x38] sm:$0xff] %vm1171, %v1090
      %1180 = vst.msk [vmem:[#allocation3 + $0x40] sm:$0xff] %vm1171, %v1092
      %1181 = vst.msk [vmem:[#allocation3 + $0x48] sm:$0xff] %vm1171, %v1094
      %1182 = vst.msk [vmem:[#allocation3 + $0x50] sm:$0xff] %vm1171, %v1096
      %1183 = vst.msk [vmem:[#allocation3 + $0x58] sm:$0xff] %vm1171, %v1098
      %1184 = vst.msk [vmem:[#allocation3 + $0x60] sm:$0xff] %vm1171, %v1100
      %1185 = vst.msk [vmem:[#allocation3 + $0x68] sm:$0xff] %vm1171, %v1102
      %1186 = vst.msk [vmem:[#allocation3 + $0x70] sm:$0xff] %vm1171, %v1104
      %1187 = vst.msk [vmem:[#allocation3 + $0x78] sm:$0xff] %vm1171, %v1106
      %1188 = vst.msk [vmem:[#allocation3 + $0x80] sm:$0xff] %vm1171, %v1108
      %1189 = vst.msk [vmem:[#allocation3 + $0x88] sm:$0xff] %vm1171, %v1110
      %1190 = vst.msk [vmem:[#allocation3 + $0x90] sm:$0xff] %vm1171, %v1112
      %1191 = vst.msk [vmem:[#allocation3 + $0x98] sm:$0xff] %vm1171, %v1114
      %1192 = vst.msk [vmem:[#allocation3 + $0xa0] sm:$0xff] %vm1171, %v1116
      %1193 = vst.msk [vmem:[#allocation3 + $0xa8] sm:$0xff] %vm1171, %v1118
      %1194 = vst.msk [vmem:[#allocation3 + $0xb0] sm:$0xff] %vm1171, %v1120
      %1195 = vst.msk [vmem:[#allocation3 + $0xb8] sm:$0xff] %vm1171, %v1122
      %1196 = vst.msk [vmem:[#allocation3 + $0xc0] sm:$0xff] %vm1171, %v1124
      %1197 = vst.msk [vmem:[#allocation3 + $0xc8] sm:$0xff] %vm1171, %v1126
      %1198 = vst.msk [vmem:[#allocation3 + $0xd0] sm:$0xff] %vm1171, %v1128
      %1199 = vst.msk [vmem:[#allocation3 + $0xd8] sm:$0xff] %vm1171, %v1130
      %1200 = vst.msk [vmem:[#allocation3 + $0xe0] sm:$0xff] %vm1171, %v1132
      %1201 = vst.msk [vmem:[#allocation3 + $0xe8] sm:$0xff] %vm1171, %v1134
      %1202 = vst.msk [vmem:[#allocation3 + $0xf0] sm:$0xff] %vm1171, %v1136
      %1203 = vst.msk [vmem:[#allocation3 + $0xf8] sm:$0xff] %vm1171, %v1138
      %v1204 = vld [vmem:[%s312 + $0x2] sm:$0xff]
      %v1205 = vld [vmem:[%s312 + $0xa] sm:$0xff]
      %v1206 = vld [vmem:[%s312 + $0x1a] sm:$0xff]
      %v1207 = vld [vmem:[%s312 + $0x22] sm:$0xff]
      %v1208 = vld [vmem:[%s312 + $0x32] sm:$0xff]
      %v1209 = vld [vmem:[%s312 + $0x3a] sm:$0xff]
      %v1210 = vld [vmem:[%s312 + $0x4a] sm:$0xff]
      %v1211 = vld [vmem:[%s312 + $0x52] sm:$0xff]
      %v1212 = vld [vmem:[%s312 + $0x62] sm:$0xff]
      %v1213 = vld [vmem:[%s312 + $0x6a] sm:$0xff]
      %v1214 = vld [vmem:[%s312 + $0x7a] sm:$0xff]
      %v1215 = vld [vmem:[%s312 + $0x82] sm:$0xff]
      %v1216 = vld [vmem:[%s312 + $0x92] sm:$0xff]
      %v1217 = vld [vmem:[%s312 + $0x9a] sm:$0xff]
      %v1218 = vld [vmem:[%s312 + $0xaa] sm:$0xff]
      %v1219 = vld [vmem:[%s312 + $0xb2] sm:$0xff]
      %v1220 = vld [vmem:[%s312 + $0xc2] sm:$0xff]
      %v1221 = vld [vmem:[%s312 + $0xca] sm:$0xff]
      %v1222 = vld [vmem:[%s312 + $0xda] sm:$0xff]
      %v1223 = vld [vmem:[%s312 + $0xe2] sm:$0xff]
      %v1224 = vld [vmem:[%s312 + $0xf2] sm:$0xff]
      %v1225 = vld [vmem:[%s312 + $0xfa] sm:$0xff]
      %v1226 = vld [vmem:[%s312 + $0x10a] sm:$0xff]
      %v1227 = vld [vmem:[%s312 + $0x112] sm:$0xff]
      %v1228 = vld [vmem:[%s312 + $0x122] sm:$0xff]
      %v1229 = vld [vmem:[%s312 + $0x12a] sm:$0xff]
      %v1230 = vld [vmem:[%s312 + $0x13a] sm:$0xff]
      %v1231 = vld [vmem:[%s312 + $0x142] sm:$0xff]
      %v1232 = vld [vmem:[%s312 + $0x152] sm:$0xff]
      %v1233 = vld [vmem:[%s312 + $0x15a] sm:$0xff]
      %v1234 = vld [vmem:[%s312 + $0x16a] sm:$0xff]
      %v1235 = vld [vmem:[%s312 + $0x172] sm:$0xff]
      %1268 = vrot.lane.b32.xlu0 %v1204, 20
      %v1269 = vpop.permute.xlu0 %1268
      %1270 = vrot.lane.b32.xlu0 %v1205, 20
      %v1271 = vpop.permute.xlu0 %1270
      %1272 = vrot.lane.b32.xlu0 %v1206, 20
      %v1273 = vpop.permute.xlu0 %1272
      %1274 = vrot.lane.b32.xlu0 %v1207, 20
      %v1275 = vpop.permute.xlu0 %1274
      %1276 = vrot.lane.b32.xlu0 %v1208, 20
      %v1277 = vpop.permute.xlu0 %1276
      %1278 = vrot.lane.b32.xlu0 %v1209, 20
      %v1279 = vpop.permute.xlu0 %1278
      %1280 = vrot.lane.b32.xlu0 %v1210, 20
      %v1281 = vpop.permute.xlu0 %1280
      %1282 = vrot.lane.b32.xlu0 %v1211, 20
      %v1283 = vpop.permute.xlu0 %1282
      %1284 = vrot.lane.b32.xlu0 %v1212, 20
      %v1285 = vpop.permute.xlu0 %1284
      %1286 = vrot.lane.b32.xlu0 %v1213, 20
      %v1287 = vpop.permute.xlu0 %1286
      %1288 = vrot.lane.b32.xlu0 %v1214, 20
      %v1289 = vpop.permute.xlu0 %1288
      %1290 = vrot.lane.b32.xlu0 %v1215, 20
      %v1291 = vpop.permute.xlu0 %1290
      %1292 = vrot.lane.b32.xlu0 %v1216, 20
      %v1293 = vpop.permute.xlu0 %1292
      %1294 = vrot.lane.b32.xlu0 %v1217, 20
      %v1295 = vpop.permute.xlu0 %1294
      %1296 = vrot.lane.b32.xlu0 %v1218, 20
      %v1297 = vpop.permute.xlu0 %1296
      %1298 = vrot.lane.b32.xlu0 %v1219, 20
      %v1299 = vpop.permute.xlu0 %1298
      %1300 = vrot.lane.b32.xlu0 %v1220, 20
      %v1301 = vpop.permute.xlu0 %1300
      %1302 = vrot.lane.b32.xlu0 %v1221, 20
      %v1303 = vpop.permute.xlu0 %1302
      %1304 = vrot.lane.b32.xlu0 %v1222, 20
      %v1305 = vpop.permute.xlu0 %1304
      %1306 = vrot.lane.b32.xlu0 %v1223, 20
      %v1307 = vpop.permute.xlu0 %1306
      %1308 = vrot.lane.b32.xlu0 %v1224, 20
      %v1309 = vpop.permute.xlu0 %1308
      %1310 = vrot.lane.b32.xlu0 %v1225, 20
      %v1311 = vpop.permute.xlu0 %1310
      %1312 = vrot.lane.b32.xlu0 %v1226, 20
      %v1313 = vpop.permute.xlu0 %1312
      %1314 = vrot.lane.b32.xlu0 %v1227, 20
      %v1315 = vpop.permute.xlu0 %1314
      %1316 = vrot.lane.b32.xlu0 %v1228, 20
      %v1317 = vpop.permute.xlu0 %1316
      %1318 = vrot.lane.b32.xlu0 %v1229, 20
      %v1319 = vpop.permute.xlu0 %1318
      %1320 = vrot.lane.b32.xlu0 %v1230, 20
      %v1321 = vpop.permute.xlu0 %1320
      %1322 = vrot.lane.b32.xlu0 %v1231, 20
      %v1323 = vpop.permute.xlu0 %1322
      %1324 = vrot.lane.b32.xlu0 %v1232, 20
      %v1325 = vpop.permute.xlu0 %1324
      %1326 = vrot.lane.b32.xlu0 %v1233, 20
      %v1327 = vpop.permute.xlu0 %1326
      %1328 = vrot.lane.b32.xlu0 %v1234, 20
      %v1329 = vpop.permute.xlu0 %1328
      %1330 = vrot.lane.b32.xlu0 %v1235, 20
      %v1331 = vpop.permute.xlu0 %1330
      %vm1364 = vcmask 195744
      %1365 = vst.msk [vmem:[#allocation3] sm:$0xff] %vm1364, %v1269
      %1366 = vst.msk [vmem:[#allocation3 + $0x8] sm:$0xff] %vm1364, %v1271
      %1367 = vst.msk [vmem:[#allocation3 + $0x10] sm:$0xff] %vm1364, %v1273
      %1368 = vst.msk [vmem:[#allocation3 + $0x18] sm:$0xff] %vm1364, %v1275
      %1369 = vst.msk [vmem:[#allocation3 + $0x20] sm:$0xff] %vm1364, %v1277
      %1370 = vst.msk [vmem:[#allocation3 + $0x28] sm:$0xff] %vm1364, %v1279
      %1371 = vst.msk [vmem:[#allocation3 + $0x30] sm:$0xff] %vm1364, %v1281
      %1372 = vst.msk [vmem:[#allocation3 + $0x38] sm:$0xff] %vm1364, %v1283
      %1373 = vst.msk [vmem:[#allocation3 + $0x40] sm:$0xff] %vm1364, %v1285
      %1374 = vst.msk [vmem:[#allocation3 + $0x48] sm:$0xff] %vm1364, %v1287
      %1375 = vst.msk [vmem:[#allocation3 + $0x50] sm:$0xff] %vm1364, %v1289
      %1376 = vst.msk [vmem:[#allocation3 + $0x58] sm:$0xff] %vm1364, %v1291
      %1377 = vst.msk [vmem:[#allocation3 + $0x60] sm:$0xff] %vm1364, %v1293
      %1378 = vst.msk [vmem:[#allocation3 + $0x68] sm:$0xff] %vm1364, %v1295
      %1379 = vst.msk [vmem:[#allocation3 + $0x70] sm:$0xff] %vm1364, %v1297
      %1380 = vst.msk [vmem:[#allocation3 + $0x78] sm:$0xff] %vm1364, %v1299
      %1381 = vst.msk [vmem:[#allocation3 + $0x80] sm:$0xff] %vm1364, %v1301
      %1382 = vst.msk [vmem:[#allocation3 + $0x88] sm:$0xff] %vm1364, %v1303
      %1383 = vst.msk [vmem:[#allocation3 + $0x90] sm:$0xff] %vm1364, %v1305
      %1384 = vst.msk [vmem:[#allocation3 + $0x98] sm:$0xff] %vm1364, %v1307
      %1385 = vst.msk [vmem:[#allocation3 + $0xa0] sm:$0xff] %vm1364, %v1309
      %1386 = vst.msk [vmem:[#allocation3 + $0xa8] sm:$0xff] %vm1364, %v1311
      %1387 = vst.msk [vmem:[#allocation3 + $0xb0] sm:$0xff] %vm1364, %v1313
      %1388 = vst.msk [vmem:[#allocation3 + $0xb8] sm:$0xff] %vm1364, %v1315
      %1389 = vst.msk [vmem:[#allocation3 + $0xc0] sm:$0xff] %vm1364, %v1317
      %1390 = vst.msk [vmem:[#allocation3 + $0xc8] sm:$0xff] %vm1364, %v1319
      %1391 = vst.msk [vmem:[#allocation3 + $0xd0] sm:$0xff] %vm1364, %v1321
      %1392 = vst.msk [vmem:[#allocation3 + $0xd8] sm:$0xff] %vm1364, %v1323
      %1393 = vst.msk [vmem:[#allocation3 + $0xe0] sm:$0xff] %vm1364, %v1325
      %1394 = vst.msk [vmem:[#allocation3 + $0xe8] sm:$0xff] %vm1364, %v1327
      %1395 = vst.msk [vmem:[#allocation3 + $0xf0] sm:$0xff] %vm1364, %v1329
      %1396 = vst.msk [vmem:[#allocation3 + $0xf8] sm:$0xff] %vm1364, %v1331
      %s1397 = scalar_lea.vmem [#allocation2], 48
      %v1398 = vld [vmem:[%s1397] sm:$0xff]
      %v1399 = vld [vmem:[%s1397 + $0x8] sm:$0xff]
      %v1400 = vld [vmem:[%s1397 + $0x18] sm:$0xff]
      %v1401 = vld [vmem:[%s1397 + $0x20] sm:$0xff]
      %v1402 = vld [vmem:[%s1397 + $0x30] sm:$0xff]
      %v1403 = vld [vmem:[%s1397 + $0x38] sm:$0xff]
      %v1404 = vld [vmem:[%s1397 + $0x48] sm:$0xff]
      %v1405 = vld [vmem:[%s1397 + $0x50] sm:$0xff]
      %v1406 = vld [vmem:[%s1397 + $0x60] sm:$0xff]
      %v1407 = vld [vmem:[%s1397 + $0x68] sm:$0xff]
      %v1408 = vld [vmem:[%s1397 + $0x78] sm:$0xff]
      %v1409 = vld [vmem:[%s1397 + $0x80] sm:$0xff]
      %v1410 = vld [vmem:[%s1397 + $0x90] sm:$0xff]
      %v1411 = vld [vmem:[%s1397 + $0x98] sm:$0xff]
      %v1412 = vld [vmem:[%s1397 + $0xa8] sm:$0xff]
      %v1413 = vld [vmem:[%s1397 + $0xb0] sm:$0xff]
      %v1414 = vld [vmem:[%s1397 + $0xc0] sm:$0xff]
      %v1415 = vld [vmem:[%s1397 + $0xc8] sm:$0xff]
      %v1416 = vld [vmem:[%s1397 + $0xd8] sm:$0xff]
      %v1417 = vld [vmem:[%s1397 + $0xe0] sm:$0xff]
      %v1418 = vld [vmem:[%s1397 + $0xf0] sm:$0xff]
      %v1419 = vld [vmem:[%s1397 + $0xf8] sm:$0xff]
      %v1420 = vld [vmem:[%s1397 + $0x108] sm:$0xff]
      %v1421 = vld [vmem:[%s1397 + $0x110] sm:$0xff]
      %v1422 = vld [vmem:[%s1397 + $0x120] sm:$0xff]
      %v1423 = vld [vmem:[%s1397 + $0x128] sm:$0xff]
      %v1424 = vld [vmem:[%s1397 + $0x138] sm:$0xff]
      %v1425 = vld [vmem:[%s1397 + $0x140] sm:$0xff]
      %v1426 = vld [vmem:[%s1397 + $0x150] sm:$0xff]
      %v1427 = vld [vmem:[%s1397 + $0x158] sm:$0xff]
      %v1428 = vld [vmem:[%s1397 + $0x168] sm:$0xff]
      %v1429 = vld [vmem:[%s1397 + $0x170] sm:$0xff]
      %1462 = vrot.lane.b32.xlu0 %v1398, 24
      %v1463 = vpop.permute.xlu0 %1462
      %1464 = vrot.lane.b32.xlu0 %v1399, 24
      %v1465 = vpop.permute.xlu0 %1464
      %1466 = vrot.lane.b32.xlu0 %v1400, 24
      %v1467 = vpop.permute.xlu0 %1466
      %1468 = vrot.lane.b32.xlu0 %v1401, 24
      %v1469 = vpop.permute.xlu0 %1468
      %1470 = vrot.lane.b32.xlu0 %v1402, 24
      %v1471 = vpop.permute.xlu0 %1470
      %1472 = vrot.lane.b32.xlu0 %v1403, 24
      %v1473 = vpop.permute.xlu0 %1472
      %1474 = vrot.lane.b32.xlu0 %v1404, 24
      %v1475 = vpop.permute.xlu0 %1474
      %1476 = vrot.lane.b32.xlu0 %v1405, 24
      %v1477 = vpop.permute.xlu0 %1476
      %1478 = vrot.lane.b32.xlu0 %v1406, 24
      %v1479 = vpop.permute.xlu0 %1478
      %1480 = vrot.lane.b32.xlu0 %v1407, 24
      %v1481 = vpop.permute.xlu0 %1480
      %1482 = vrot.lane.b32.xlu0 %v1408, 24
      %v1483 = vpop.permute.xlu0 %1482
      %1484 = vrot.lane.b32.xlu0 %v1409, 24
      %v1485 = vpop.permute.xlu0 %1484
      %1486 = vrot.lane.b32.xlu0 %v1410, 24
      %v1487 = vpop.permute.xlu0 %1486
      %1488 = vrot.lane.b32.xlu0 %v1411, 24
      %v1489 = vpop.permute.xlu0 %1488
      %1490 = vrot.lane.b32.xlu0 %v1412, 24
      %v1491 = vpop.permute.xlu0 %1490
      %1492 = vrot.lane.b32.xlu0 %v1413, 24
      %v1493 = vpop.permute.xlu0 %1492
      %1494 = vrot.lane.b32.xlu0 %v1414, 24
      %v1495 = vpop.permute.xlu0 %1494
      %1496 = vrot.lane.b32.xlu0 %v1415, 24
      %v1497 = vpop.permute.xlu0 %1496
      %1498 = vrot.lane.b32.xlu0 %v1416, 24
      %v1499 = vpop.permute.xlu0 %1498
      %1500 = vrot.lane.b32.xlu0 %v1417, 24
      %v1501 = vpop.permute.xlu0 %1500
      %1502 = vrot.lane.b32.xlu0 %v1418, 24
      %v1503 = vpop.permute.xlu0 %1502
      %1504 = vrot.lane.b32.xlu0 %v1419, 24
      %v1505 = vpop.permute.xlu0 %1504
      %1506 = vrot.lane.b32.xlu0 %v1420, 24
      %v1507 = vpop.permute.xlu0 %1506
      %1508 = vrot.lane.b32.xlu0 %v1421, 24
      %v1509 = vpop.permute.xlu0 %1508
      %1510 = vrot.lane.b32.xlu0 %v1422, 24
      %v1511 = vpop.permute.xlu0 %1510
      %1512 = vrot.lane.b32.xlu0 %v1423, 24
      %v1513 = vpop.permute.xlu0 %1512
      %1514 = vrot.lane.b32.xlu0 %v1424, 24
      %v1515 = vpop.permute.xlu0 %1514
      %1516 = vrot.lane.b32.xlu0 %v1425, 24
      %v1517 = vpop.permute.xlu0 %1516
      %1518 = vrot.lane.b32.xlu0 %v1426, 24
      %v1519 = vpop.permute.xlu0 %1518
      %1520 = vrot.lane.b32.xlu0 %v1427, 24
      %v1521 = vpop.permute.xlu0 %1520
      %1522 = vrot.lane.b32.xlu0 %v1428, 24
      %v1523 = vpop.permute.xlu0 %1522
      %1524 = vrot.lane.b32.xlu0 %v1429, 24
      %v1525 = vpop.permute.xlu0 %1524
      %vm1558 = vcmask 228544
      %1559 = vst.msk [vmem:[#allocation3] sm:$0xff] %vm1558, %v1463
      %1560 = vst.msk [vmem:[#allocation3 + $0x8] sm:$0xff] %vm1558, %v1465
      %1561 = vst.msk [vmem:[#allocation3 + $0x10] sm:$0xff] %vm1558, %v1467
      %1562 = vst.msk [vmem:[#allocation3 + $0x18] sm:$0xff] %vm1558, %v1469
      %1563 = vst.msk [vmem:[#allocation3 + $0x20] sm:$0xff] %vm1558, %v1471
      %1564 = vst.msk [vmem:[#allocation3 + $0x28] sm:$0xff] %vm1558, %v1473
      %1565 = vst.msk [vmem:[#allocation3 + $0x30] sm:$0xff] %vm1558, %v1475
      %1566 = vst.msk [vmem:[#allocation3 + $0x38] sm:$0xff] %vm1558, %v1477
      %1567 = vst.msk [vmem:[#allocation3 + $0x40] sm:$0xff] %vm1558, %v1479
      %1568 = vst.msk [vmem:[#allocation3 + $0x48] sm:$0xff] %vm1558, %v1481
      %1569 = vst.msk [vmem:[#allocation3 + $0x50] sm:$0xff] %vm1558, %v1483
      %1570 = vst.msk [vmem:[#allocation3 + $0x58] sm:$0xff] %vm1558, %v1485
      %1571 = vst.msk [vmem:[#allocation3 + $0x60] sm:$0xff] %vm1558, %v1487
      %1572 = vst.msk [vmem:[#allocation3 + $0x68] sm:$0xff] %vm1558, %v1489
      %1573 = vst.msk [vmem:[#allocation3 + $0x70] sm:$0xff] %vm1558, %v1491
      %1574 = vst.msk [vmem:[#allocation3 + $0x78] sm:$0xff] %vm1558, %v1493
      %1575 = vst.msk [vmem:[#allocation3 + $0x80] sm:$0xff] %vm1558, %v1495
      %1576 = vst.msk [vmem:[#allocation3 + $0x88] sm:$0xff] %vm1558, %v1497
      %1577 = vst.msk [vmem:[#allocation3 + $0x90] sm:$0xff] %vm1558, %v1499
      %1578 = vst.msk [vmem:[#allocation3 + $0x98] sm:$0xff] %vm1558, %v1501
      %1579 = vst.msk [vmem:[#allocation3 + $0xa0] sm:$0xff] %vm1558, %v1503
      %1580 = vst.msk [vmem:[#allocation3 + $0xa8] sm:$0xff] %vm1558, %v1505
      %1581 = vst.msk [vmem:[#allocation3 + $0xb0] sm:$0xff] %vm1558, %v1507
      %1582 = vst.msk [vmem:[#allocation3 + $0xb8] sm:$0xff] %vm1558, %v1509
      %1583 = vst.msk [vmem:[#allocation3 + $0xc0] sm:$0xff] %vm1558, %v1511
      %1584 = vst.msk [vmem:[#allocation3 + $0xc8] sm:$0xff] %vm1558, %v1513
      %1585 = vst.msk [vmem:[#allocation3 + $0xd0] sm:$0xff] %vm1558, %v1515
      %1586 = vst.msk [vmem:[#allocation3 + $0xd8] sm:$0xff] %vm1558, %v1517
      %1587 = vst.msk [vmem:[#allocation3 + $0xe0] sm:$0xff] %vm1558, %v1519
      %1588 = vst.msk [vmem:[#allocation3 + $0xe8] sm:$0xff] %vm1558, %v1521
      %1589 = vst.msk [vmem:[#allocation3 + $0xf0] sm:$0xff] %vm1558, %v1523
      %1590 = vst.msk [vmem:[#allocation3 + $0xf8] sm:$0xff] %vm1558, %v1525
      %v1591 = vld [vmem:[%s1397 + $0x1] sm:$0xff]
      %v1592 = vld [vmem:[%s1397 + $0x9] sm:$0xff]
      %v1593 = vld [vmem:[%s1397 + $0x19] sm:$0xff]
      %v1594 = vld [vmem:[%s1397 + $0x21] sm:$0xff]
      %v1595 = vld [vmem:[%s1397 + $0x31] sm:$0xff]
      %v1596 = vld [vmem:[%s1397 + $0x39] sm:$0xff]
      %v1597 = vld [vmem:[%s1397 + $0x49] sm:$0xff]
      %v1598 = vld [vmem:[%s1397 + $0x51] sm:$0xff]
      %v1599 = vld [vmem:[%s1397 + $0x61] sm:$0xff]
      %v1600 = vld [vmem:[%s1397 + $0x69] sm:$0xff]
      %v1601 = vld [vmem:[%s1397 + $0x79] sm:$0xff]
      %v1602 = vld [vmem:[%s1397 + $0x81] sm:$0xff]
      %v1603 = vld [vmem:[%s1397 + $0x91] sm:$0xff]
      %v1604 = vld [vmem:[%s1397 + $0x99] sm:$0xff]
      %v1605 = vld [vmem:[%s1397 + $0xa9] sm:$0xff]
      %v1606 = vld [vmem:[%s1397 + $0xb1] sm:$0xff]
      %v1607 = vld [vmem:[%s1397 + $0xc1] sm:$0xff]
      %v1608 = vld [vmem:[%s1397 + $0xc9] sm:$0xff]
      %v1609 = vld [vmem:[%s1397 + $0xd9] sm:$0xff]
      %v1610 = vld [vmem:[%s1397 + $0xe1] sm:$0xff]
      %v1611 = vld [vmem:[%s1397 + $0xf1] sm:$0xff]
      %v1612 = vld [vmem:[%s1397 + $0xf9] sm:$0xff]
      %v1613 = vld [vmem:[%s1397 + $0x109] sm:$0xff]
      %v1614 = vld [vmem:[%s1397 + $0x111] sm:$0xff]
      %v1615 = vld [vmem:[%s1397 + $0x121] sm:$0xff]
      %v1616 = vld [vmem:[%s1397 + $0x129] sm:$0xff]
      %v1617 = vld [vmem:[%s1397 + $0x139] sm:$0xff]
      %v1618 = vld [vmem:[%s1397 + $0x141] sm:$0xff]
      %v1619 = vld [vmem:[%s1397 + $0x151] sm:$0xff]
      %v1620 = vld [vmem:[%s1397 + $0x159] sm:$0xff]
      %v1621 = vld [vmem:[%s1397 + $0x169] sm:$0xff]
      %v1622 = vld [vmem:[%s1397 + $0x171] sm:$0xff]
      %1655 = vrot.lane.b32.xlu0 %v1591, 28
      %v1656 = vpop.permute.xlu0 %1655
      %1657 = vrot.lane.b32.xlu0 %v1592, 28
      %v1658 = vpop.permute.xlu0 %1657
      %1659 = vrot.lane.b32.xlu0 %v1593, 28
      %v1660 = vpop.permute.xlu0 %1659
      %1661 = vrot.lane.b32.xlu0 %v1594, 28
      %v1662 = vpop.permute.xlu0 %1661
      %1663 = vrot.lane.b32.xlu0 %v1595, 28
      %v1664 = vpop.permute.xlu0 %1663
      %1665 = vrot.lane.b32.xlu0 %v1596, 28
      %v1666 = vpop.permute.xlu0 %1665
      %1667 = vrot.lane.b32.xlu0 %v1597, 28
      %v1668 = vpop.permute.xlu0 %1667
      %1669 = vrot.lane.b32.xlu0 %v1598, 28
      %v1670 = vpop.permute.xlu0 %1669
      %1671 = vrot.lane.b32.xlu0 %v1599, 28
      %v1672 = vpop.permute.xlu0 %1671
      %1673 = vrot.lane.b32.xlu0 %v1600, 28
      %v1674 = vpop.permute.xlu0 %1673
      %1675 = vrot.lane.b32.xlu0 %v1601, 28
      %v1676 = vpop.permute.xlu0 %1675
      %1677 = vrot.lane.b32.xlu0 %v1602, 28
      %v1678 = vpop.permute.xlu0 %1677
      %1679 = vrot.lane.b32.xlu0 %v1603, 28
      %v1680 = vpop.permute.xlu0 %1679
      %1681 = vrot.lane.b32.xlu0 %v1604, 28
      %v1682 = vpop.permute.xlu0 %1681
      %1683 = vrot.lane.b32.xlu0 %v1605, 28
      %v1684 = vpop.permute.xlu0 %1683
      %1685 = vrot.lane.b32.xlu0 %v1606, 28
      %v1686 = vpop.permute.xlu0 %1685
      %1687 = vrot.lane.b32.xlu0 %v1607, 28
      %v1688 = vpop.permute.xlu0 %1687
      %1689 = vrot.lane.b32.xlu0 %v1608, 28
      %v1690 = vpop.permute.xlu0 %1689
      %1691 = vrot.lane.b32.xlu0 %v1609, 28
      %v1692 = vpop.permute.xlu0 %1691
      %1693 = vrot.lane.b32.xlu0 %v1610, 28
      %v1694 = vpop.permute.xlu0 %1693
      %1695 = vrot.lane.b32.xlu0 %v1611, 28
      %v1696 = vpop.permute.xlu0 %1695
      %1697 = vrot.lane.b32.xlu0 %v1612, 28
      %v1698 = vpop.permute.xlu0 %1697
      %1699 = vrot.lane.b32.xlu0 %v1613, 28
      %v1700 = vpop.permute.xlu0 %1699
      %1701 = vrot.lane.b32.xlu0 %v1614, 28
      %v1702 = vpop.permute.xlu0 %1701
      %1703 = vrot.lane.b32.xlu0 %v1615, 28
      %v1704 = vpop.permute.xlu0 %1703
      %1705 = vrot.lane.b32.xlu0 %v1616, 28
      %v1706 = vpop.permute.xlu0 %1705
      %1707 = vrot.lane.b32.xlu0 %v1617, 28
      %v1708 = vpop.permute.xlu0 %1707
      %1709 = vrot.lane.b32.xlu0 %v1618, 28
      %v1710 = vpop.permute.xlu0 %1709
      %1711 = vrot.lane.b32.xlu0 %v1619, 28
      %v1712 = vpop.permute.xlu0 %1711
      %1713 = vrot.lane.b32.xlu0 %v1620, 28
      %v1714 = vpop.permute.xlu0 %1713
      %1715 = vrot.lane.b32.xlu0 %v1621, 28
      %v1716 = vpop.permute.xlu0 %1715
      %1717 = vrot.lane.b32.xlu0 %v1622, 28
      %v1718 = vpop.permute.xlu0 %1717
      %vm1751 = vcmask 261344
      %1752 = vst.msk [vmem:[#allocation3] sm:$0xff] %vm1751, %v1656
      %1753 = vst.msk [vmem:[#allocation3 + $0x8] sm:$0xff] %vm1751, %v1658
      %1754 = vst.msk [vmem:[#allocation3 + $0x10] sm:$0xff] %vm1751, %v1660
      %1755 = vst.msk [vmem:[#allocation3 + $0x18] sm:$0xff] %vm1751, %v1662
      %1756 = vst.msk [vmem:[#allocation3 + $0x20] sm:$0xff] %vm1751, %v1664
      %1757 = vst.msk [vmem:[#allocation3 + $0x28] sm:$0xff] %vm1751, %v1666
      %1758 = vst.msk [vmem:[#allocation3 + $0x30] sm:$0xff] %vm1751, %v1668
      %1759 = vst.msk [vmem:[#allocation3 + $0x38] sm:$0xff] %vm1751, %v1670
      %1760 = vst.msk [vmem:[#allocation3 + $0x40] sm:$0xff] %vm1751, %v1672
      %1761 = vst.msk [vmem:[#allocation3 + $0x48] sm:$0xff] %vm1751, %v1674
      %1762 = vst.msk [vmem:[#allocation3 + $0x50] sm:$0xff] %vm1751, %v1676
      %1763 = vst.msk [vmem:[#allocation3 + $0x58] sm:$0xff] %vm1751, %v1678
      %1764 = vst.msk [vmem:[#allocation3 + $0x60] sm:$0xff] %vm1751, %v1680
      %1765 = vst.msk [vmem:[#allocation3 + $0x68] sm:$0xff] %vm1751, %v1682
      %1766 = vst.msk [vmem:[#allocation3 + $0x70] sm:$0xff] %vm1751, %v1684
      %1767 = vst.msk [vmem:[#allocation3 + $0x78] sm:$0xff] %vm1751, %v1686
      %1768 = vst.msk [vmem:[#allocation3 + $0x80] sm:$0xff] %vm1751, %v1688
      %1769 = vst.msk [vmem:[#allocation3 + $0x88] sm:$0xff] %vm1751, %v1690
      %1770 = vst.msk [vmem:[#allocation3 + $0x90] sm:$0xff] %vm1751, %v1692
      %1771 = vst.msk [vmem:[#allocation3 + $0x98] sm:$0xff] %vm1751, %v1694
      %1772 = vst.msk [vmem:[#allocation3 + $0xa0] sm:$0xff] %vm1751, %v1696
      %1773 = vst.msk [vmem:[#allocation3 + $0xa8] sm:$0xff] %vm1751, %v1698
      %1774 = vst.msk [vmem:[#allocation3 + $0xb0] sm:$0xff] %vm1751, %v1700
      %1775 = vst.msk [vmem:[#allocation3 + $0xb8] sm:$0xff] %vm1751, %v1702
      %1776 = vst.msk [vmem:[#allocation3 + $0xc0] sm:$0xff] %vm1751, %v1704
      %1777 = vst.msk [vmem:[#allocation3 + $0xc8] sm:$0xff] %vm1751, %v1706
      %1778 = vst.msk [vmem:[#allocation3 + $0xd0] sm:$0xff] %vm1751, %v1708
      %1779 = vst.msk [vmem:[#allocation3 + $0xd8] sm:$0xff] %vm1751, %v1710
      %1780 = vst.msk [vmem:[#allocation3 + $0xe0] sm:$0xff] %vm1751, %v1712
      %1781 = vst.msk [vmem:[#allocation3 + $0xe8] sm:$0xff] %vm1751, %v1714
      %1782 = vst.msk [vmem:[#allocation3 + $0xf0] sm:$0xff] %vm1751, %v1716
      %1783 = vst.msk [vmem:[#allocation3 + $0xf8] sm:$0xff] %vm1751, %v1718
      %v1784 = vld [vmem:[%s1397 + $0x2] sm:$0xff]
      %v1785 = vld [vmem:[%s1397 + $0xa] sm:$0xff]
      %v1786 = vld [vmem:[%s1397 + $0x1a] sm:$0xff]
      %v1787 = vld [vmem:[%s1397 + $0x22] sm:$0xff]
      %v1788 = vld [vmem:[%s1397 + $0x32] sm:$0xff]
      %v1789 = vld [vmem:[%s1397 + $0x3a] sm:$0xff]
      %v1790 = vld [vmem:[%s1397 + $0x4a] sm:$0xff]
      %v1791 = vld [vmem:[%s1397 + $0x52] sm:$0xff]
      %v1792 = vld [vmem:[%s1397 + $0x62] sm:$0xff]
      %v1793 = vld [vmem:[%s1397 + $0x6a] sm:$0xff]
      %v1794 = vld [vmem:[%s1397 + $0x7a] sm:$0xff]
      %v1795 = vld [vmem:[%s1397 + $0x82] sm:$0xff]
      %v1796 = vld [vmem:[%s1397 + $0x92] sm:$0xff]
      %v1797 = vld [vmem:[%s1397 + $0x9a] sm:$0xff]
      %v1798 = vld [vmem:[%s1397 + $0xaa] sm:$0xff]
      %v1799 = vld [vmem:[%s1397 + $0xb2] sm:$0xff]
      %v1800 = vld [vmem:[%s1397 + $0xc2] sm:$0xff]
      %v1801 = vld [vmem:[%s1397 + $0xca] sm:$0xff]
      %v1802 = vld [vmem:[%s1397 + $0xda] sm:$0xff]
      %v1803 = vld [vmem:[%s1397 + $0xe2] sm:$0xff]
      %v1804 = vld [vmem:[%s1397 + $0xf2] sm:$0xff]
      %v1805 = vld [vmem:[%s1397 + $0xfa] sm:$0xff]
      %v1806 = vld [vmem:[%s1397 + $0x10a] sm:$0xff]
      %v1807 = vld [vmem:[%s1397 + $0x112] sm:$0xff]
      %v1808 = vld [vmem:[%s1397 + $0x122] sm:$0xff]
      %v1809 = vld [vmem:[%s1397 + $0x12a] sm:$0xff]
      %v1810 = vld [vmem:[%s1397 + $0x13a] sm:$0xff]
      %v1811 = vld [vmem:[%s1397 + $0x142] sm:$0xff]
      %v1812 = vld [vmem:[%s1397 + $0x152] sm:$0xff]
      %v1813 = vld [vmem:[%s1397 + $0x15a] sm:$0xff]
      %v1814 = vld [vmem:[%s1397 + $0x16a] sm:$0xff]
      %v1815 = vld [vmem:[%s1397 + $0x172] sm:$0xff]
      %1848 = vrot.lane.b32.xlu0 %v1784, 32
      %v1849 = vpop.permute.xlu0 %1848
      %1850 = vrot.lane.b32.xlu0 %v1785, 32
      %v1851 = vpop.permute.xlu0 %1850
      %1852 = vrot.lane.b32.xlu0 %v1786, 32
      %v1853 = vpop.permute.xlu0 %1852
      %1854 = vrot.lane.b32.xlu0 %v1787, 32
      %v1855 = vpop.permute.xlu0 %1854
      %1856 = vrot.lane.b32.xlu0 %v1788, 32
      %v1857 = vpop.permute.xlu0 %1856
      %1858 = vrot.lane.b32.xlu0 %v1789, 32
      %v1859 = vpop.permute.xlu0 %1858
      %1860 = vrot.lane.b32.xlu0 %v1790, 32
      %v1861 = vpop.permute.xlu0 %1860
      %1862 = vrot.lane.b32.xlu0 %v1791, 32
      %v1863 = vpop.permute.xlu0 %1862
      %1864 = vrot.lane.b32.xlu0 %v1792, 32
      %v1865 = vpop.permute.xlu0 %1864
      %1866 = vrot.lane.b32.xlu0 %v1793, 32
      %v1867 = vpop.permute.xlu0 %1866
      %1868 = vrot.lane.b32.xlu0 %v1794, 32
      %v1869 = vpop.permute.xlu0 %1868
      %1870 = vrot.lane.b32.xlu0 %v1795, 32
      %v1871 = vpop.permute.xlu0 %1870
      %1872 = vrot.lane.b32.xlu0 %v1796, 32
      %v1873 = vpop.permute.xlu0 %1872
      %1874 = vrot.lane.b32.xlu0 %v1797, 32
      %v1875 = vpop.permute.xlu0 %1874
      %1876 = vrot.lane.b32.xlu0 %v1798, 32
      %v1877 = vpop.permute.xlu0 %1876
      %1878 = vrot.lane.b32.xlu0 %v1799, 32
      %v1879 = vpop.permute.xlu0 %1878
      %1880 = vrot.lane.b32.xlu0 %v1800, 32
      %v1881 = vpop.permute.xlu0 %1880
      %1882 = vrot.lane.b32.xlu0 %v1801, 32
      %v1883 = vpop.permute.xlu0 %1882
      %1884 = vrot.lane.b32.xlu0 %v1802, 32
      %v1885 = vpop.permute.xlu0 %1884
      %1886 = vrot.lane.b32.xlu0 %v1803, 32
      %v1887 = vpop.permute.xlu0 %1886
      %1888 = vrot.lane.b32.xlu0 %v1804, 32
      %v1889 = vpop.permute.xlu0 %1888
      %1890 = vrot.lane.b32.xlu0 %v1805, 32
      %v1891 = vpop.permute.xlu0 %1890
      %1892 = vrot.lane.b32.xlu0 %v1806, 32
      %v1893 = vpop.permute.xlu0 %1892
      %1894 = vrot.lane.b32.xlu0 %v1807, 32
      %v1895 = vpop.permute.xlu0 %1894
      %1896 = vrot.lane.b32.xlu0 %v1808, 32
      %v1897 = vpop.permute.xlu0 %1896
      %1898 = vrot.lane.b32.xlu0 %v1809, 32
      %v1899 = vpop.permute.xlu0 %1898
      %1900 = vrot.lane.b32.xlu0 %v1810, 32
      %v1901 = vpop.permute.xlu0 %1900
      %1902 = vrot.lane.b32.xlu0 %v1811, 32
      %v1903 = vpop.permute.xlu0 %1902
      %1904 = vrot.lane.b32.xlu0 %v1812, 32
      %v1905 = vpop.permute.xlu0 %1904
      %1906 = vrot.lane.b32.xlu0 %v1813, 32
      %v1907 = vpop.permute.xlu0 %1906
      %1908 = vrot.lane.b32.xlu0 %v1814, 32
      %v1909 = vpop.permute.xlu0 %1908
      %1910 = vrot.lane.b32.xlu0 %v1815, 32
      %v1911 = vpop.permute.xlu0 %1910
      %vm1944 = vcmask 294144
      %1945 = vst.msk [vmem:[#allocation3] sm:$0xff] %vm1944, %v1849
      %1946 = vst.msk [vmem:[#allocation3 + $0x8] sm:$0xff] %vm1944, %v1851
      %1947 = vst.msk [vmem:[#allocation3 + $0x10] sm:$0xff] %vm1944, %v1853
      %1948 = vst.msk [vmem:[#allocation3 + $0x18] sm:$0xff] %vm1944, %v1855
      %1949 = vst.msk [vmem:[#allocation3 + $0x20] sm:$0xff] %vm1944, %v1857
      %1950 = vst.msk [vmem:[#allocation3 + $0x28] sm:$0xff] %vm1944, %v1859
      %1951 = vst.msk [vmem:[#allocation3 + $0x30] sm:$0xff] %vm1944, %v1861
      %1952 = vst.msk [vmem:[#allocation3 + $0x38] sm:$0xff] %vm1944, %v1863
      %1953 = vst.msk [vmem:[#allocation3 + $0x40] sm:$0xff] %vm1944, %v1865
      %1954 = vst.msk [vmem:[#allocation3 + $0x48] sm:$0xff] %vm1944, %v1867
      %1955 = vst.msk [vmem:[#allocation3 + $0x50] sm:$0xff] %vm1944, %v1869
      %1956 = vst.msk [vmem:[#allocation3 + $0x58] sm:$0xff] %vm1944, %v1871
      %1957 = vst.msk [vmem:[#allocation3 + $0x60] sm:$0xff] %vm1944, %v1873
      %1958 = vst.msk [vmem:[#allocation3 + $0x68] sm:$0xff] %vm1944, %v1875
      %1959 = vst.msk [vmem:[#allocation3 + $0x70] sm:$0xff] %vm1944, %v1877
      %1960 = vst.msk [vmem:[#allocation3 + $0x78] sm:$0xff] %vm1944, %v1879
      %1961 = vst.msk [vmem:[#allocation3 + $0x80] sm:$0xff] %vm1944, %v1881
      %1962 = vst.msk [vmem:[#allocation3 + $0x88] sm:$0xff] %vm1944, %v1883
      %1963 = vst.msk [vmem:[#allocation3 + $0x90] sm:$0xff] %vm1944, %v1885
      %1964 = vst.msk [vmem:[#allocation3 + $0x98] sm:$0xff] %vm1944, %v1887
      %1965 = vst.msk [vmem:[#allocation3 + $0xa0] sm:$0xff] %vm1944, %v1889
      %1966 = vst.msk [vmem:[#allocation3 + $0xa8] sm:$0xff] %vm1944, %v1891
      %1967 = vst.msk [vmem:[#allocation3 + $0xb0] sm:$0xff] %vm1944, %v1893
      %1968 = vst.msk [vmem:[#allocation3 + $0xb8] sm:$0xff] %vm1944, %v1895
      %1969 = vst.msk [vmem:[#allocation3 + $0xc0] sm:$0xff] %vm1944, %v1897
      %1970 = vst.msk [vmem:[#allocation3 + $0xc8] sm:$0xff] %vm1944, %v1899
      %1971 = vst.msk [vmem:[#allocation3 + $0xd0] sm:$0xff] %vm1944, %v1901
      %1972 = vst.msk [vmem:[#allocation3 + $0xd8] sm:$0xff] %vm1944, %v1903
      %1973 = vst.msk [vmem:[#allocation3 + $0xe0] sm:$0xff] %vm1944, %v1905
      %1974 = vst.msk [vmem:[#allocation3 + $0xe8] sm:$0xff] %vm1944, %v1907
      %1975 = vst.msk [vmem:[#allocation3 + $0xf0] sm:$0xff] %vm1944, %v1909
      %1976 = vst.msk [vmem:[#allocation3 + $0xf8] sm:$0xff] %vm1944, %v1911
      %v1977 = vld [vmem:[#allocation3] sm:$0xff]
      %v1978 = vld [vmem:[#allocation3 + $0x8] sm:$0xff]
      %v1979 = vld [vmem:[#allocation3 + $0x10] sm:$0xff]
      %v1980 = vld [vmem:[#allocation3 + $0x18] sm:$0xff]
      %v1981 = vld [vmem:[#allocation3 + $0x20] sm:$0xff]
      %v1982 = vld [vmem:[#allocation3 + $0x28] sm:$0xff]
      %v1983 = vld [vmem:[#allocation3 + $0x30] sm:$0xff]
      %v1984 = vld [vmem:[#allocation3 + $0x38] sm:$0xff]
      %v1985 = vld [vmem:[#allocation3 + $0x40] sm:$0xff]
      %v1986 = vld [vmem:[#allocation3 + $0x48] sm:$0xff]
      %v1987 = vld [vmem:[#allocation3 + $0x50] sm:$0xff]
      %v1988 = vld [vmem:[#allocation3 + $0x58] sm:$0xff]
      %v1989 = vld [vmem:[#allocation3 + $0x60] sm:$0xff]
      %v1990 = vld [vmem:[#allocation3 + $0x68] sm:$0xff]
      %v1991 = vld [vmem:[#allocation3 + $0x70] sm:$0xff]
      %v1992 = vld [vmem:[#allocation3 + $0x78] sm:$0xff]
      %v1993 = vld [vmem:[#allocation3 + $0x80] sm:$0xff]
      %v1994 = vld [vmem:[#allocation3 + $0x88] sm:$0xff]
      %v1995 = vld [vmem:[#allocation3 + $0x90] sm:$0xff]
      %v1996 = vld [vmem:[#allocation3 + $0x98] sm:$0xff]
      %v1997 = vld [vmem:[#allocation3 + $0xa0] sm:$0xff]
      %v1998 = vld [vmem:[#allocation3 + $0xa8] sm:$0xff]
      %v1999 = vld [vmem:[#allocation3 + $0xb0] sm:$0xff]
      %v2000 = vld [vmem:[#allocation3 + $0xb8] sm:$0xff]
      %v2001 = vld [vmem:[#allocation3 + $0xc0] sm:$0xff]
      %v2002 = vld [vmem:[#allocation3 + $0xc8] sm:$0xff]
      %v2003 = vld [vmem:[#allocation3 + $0xd0] sm:$0xff]
      %v2004 = vld [vmem:[#allocation3 + $0xd8] sm:$0xff]
      %v2005 = vld [vmem:[#allocation3 + $0xe0] sm:$0xff]
      %v2006 = vld [vmem:[#allocation3 + $0xe8] sm:$0xff]
      %v2007 = vld [vmem:[#allocation3 + $0xf0] sm:$0xff]
      %v2008 = vld [vmem:[#allocation3 + $0xf8] sm:$0xff]
      %v2009 = vld [vmem:[%s1] sm:$0xff]
      %v2010 = vld [vmem:[%s1 + $0x8] sm:$0xff]
      %v2011 = vld [vmem:[%s1 + $0x10] sm:$0xff]
      %v2012 = vld [vmem:[%s1 + $0x18] sm:$0xff]
      %v2013 = vld [vmem:[%s1 + $0x20] sm:$0xf]
      %vm2014 = vcmask 293888
      %v2016 = vsel %vm2014, %v1977, 0
      %v2019 = vsel %vm2014, %v1978, 0
      %v2022 = vsel %vm2014, %v1979, 0
      %v2025 = vsel %vm2014, %v1980, 0
      %v2028 = vsel %vm2014, %v1981, 0
      %v2031 = vsel %vm2014, %v1982, 0
      %v2034 = vsel %vm2014, %v1983, 0
      %v2037 = vsel %vm2014, %v1984, 0
      %v2040 = vsel %vm2014, %v1985, 0
      %v2043 = vsel %vm2014, %v1986, 0
      %v2046 = vsel %vm2014, %v1987, 0
      %v2049 = vsel %vm2014, %v1988, 0
      %v2052 = vsel %vm2014, %v1989, 0
      %v2055 = vsel %vm2014, %v1990, 0
      %v2058 = vsel %vm2014, %v1991, 0
      %v2061 = vsel %vm2014, %v1992, 0
      %v2064 = vsel %vm2014, %v1993, 0
      %v2067 = vsel %vm2014, %v1994, 0
      %v2070 = vsel %vm2014, %v1995, 0
      %v2073 = vsel %vm2014, %v1996, 0
      %v2076 = vsel %vm2014, %v1997, 0
      %v2079 = vsel %vm2014, %v1998, 0
      %v2082 = vsel %vm2014, %v1999, 0
      %v2085 = vsel %vm2014, %v2000, 0
      %v2088 = vsel %vm2014, %v2001, 0
      %v2091 = vsel %vm2014, %v2002, 0
      %v2094 = vsel %vm2014, %v2003, 0
      %v2097 = vsel %vm2014, %v2004, 0
      %v2100 = vsel %vm2014, %v2005, 0
      %v2103 = vsel %vm2014, %v2006, 0
      %v2106 = vsel %vm2014, %v2007, 0
      %v2109 = vsel %vm2014, %v2008, 0
      %vm2111 = vcmask 1043456
      %v2113 = vsel %vm2111, %v2013, 0
      %2115 = vmatprep.subr.mxu0 0.0
      %2116 = vmatpush1.msra.mxu0 0.0
      %2117 = vmatprep.subr.mxu0 0.0
      %2118 = vmatpush1.msra.mxu0 0.0
      %2119 = vmatprep.subr.mxu0 0.0
      %2120 = vmatpush1.msra.mxu0 0.0
      %2121 = vmatprep.subr.mxu0 0.0
      %2122 = vmatpush1.msra.mxu0 0.0
      %2123 = vmatprep.subr.mxu0 0.0
      %2124 = vmatpush1.msra.mxu0 0.0
      %2125 = vmatprep.subr.mxu0 0.0
      %2126 = vmatpush1.msra.mxu0 0.0
      %2127 = vmatprep.subr.mxu0 0.0
      %2128 = vmatpush1.msra.mxu0 0.0
      %2129 = vmatprep.subr.mxu0 0.0
      %2130 = vmatpush1.msra.mxu0 0.0
      %2131 = vmatprep.subr.mxu0 0.0
      %2132 = vmatpush1.msra.mxu0 0.0
      %2133 = vmatprep.subr.mxu0 0.0
      %2134 = vmatpush1.msra.mxu0 0.0
      %2135 = vmatprep.subr.mxu0 0.0
      %2136 = vmatpush1.msra.mxu0 0.0
      %2137 = vmatprep.subr.mxu0 0.0
      %2138 = vmatpush1.msra.mxu0 %v2113
      %2139 = vmatprep.subr.mxu0 0.0
      %2140 = vmatpush1.msra.mxu0 %v2012
      %2141 = vmatprep.subr.mxu0 0.0
      %2142 = vmatpush1.msra.mxu0 %v2011
      %2143 = vmatprep.subr.mxu0 0.0
      %2144 = vmatpush1.msra.mxu0 %v2010
      %2145 = vmatprep.subr.mxu0 0.0
      %2146 = vmatpush1.msra.mxu0 %v2009
      %2147 = vmatprep.subr.mxu0 0.0
      %2148 = vmatpush2.msra.mxu0 0.0
      %2149 = vmatprep.subr.mxu0 0.0
      %2150 = vmatpush2.msra.mxu0 0.0
      %2151 = vmatprep.subr.mxu0 0.0
      %2152 = vmatpush2.msra.mxu0 0.0
      %2153 = vmatprep.subr.mxu0 0.0
      %2154 = vmatpush2.msra.mxu0 0.0
      %2155 = vmatprep.subr.mxu0 0.0
      %2156 = vmatpush2.msra.mxu0 0.0
      %2157 = vmatprep.subr.mxu0 0.0
      %2158 = vmatpush2.msra.mxu0 0.0
      %2159 = vmatprep.subr.mxu0 0.0
      %2160 = vmatpush2.msra.mxu0 0.0
      %2161 = vmatprep.subr.mxu0 0.0
      %2162 = vmatpush2.msra.mxu0 0.0
      %2163 = vmatprep.subr.mxu0 0.0
      %2164 = vmatpush2.msra.mxu0 0.0
      %2165 = vmatprep.subr.mxu0 0.0
      %2166 = vmatpush2.msra.mxu0 0.0
      %2167 = vmatprep.subr.mxu0 0.0
      %2168 = vmatpush2.msra.mxu0 0.0
      %2169 = vmatprep.subr.mxu0 0.0
      %2170 = vmatpush2.msra.mxu0 0.0
      %2171 = vmatprep.subr.mxu0 0.0
      %2172 = vmatpush2.msra.mxu0 0.0
      %2173 = vmatprep.subr.mxu0 0.0
      %2174 = vmatpush2.msra.mxu0 0.0
      %2175 = vmatprep.subr.mxu0 0.0
      %2176 = vmatpush2.msra.mxu0 0.0
      %2177 = vmatprep.subr.mxu0 0.0
      %2178 = vmatpush2.msra.mxu0 0.0
      %2179 = vmatprep.mubr.f32.mxu0 0.0
      %2180 = vmatmul.mubr.f32.gmra.mxu0 %v2016
      %v2181 = vpop.f32.mrf.mxu0
      %v2182 = vadd.f32 0.0, %v2181
      %v2183 = vpop.f32.mrf.mxu0
      %2184 = vmatprep.mubr.f32.mxu0 0.0
      %2185 = vmatmul.mubr.f32.gmra.mxu0 %v2019
      %v2186 = vpop.f32.mrf.mxu0
      %v2187 = vadd.f32 0.0, %v2186
      %v2188 = vpop.f32.mrf.mxu0
      %2189 = vmatprep.mubr.f32.mxu0 0.0
      %2190 = vmatmul.mubr.f32.gmra.mxu0 %v2022
      %v2191 = vpop.f32.mrf.mxu0
      %v2192 = vadd.f32 0.0, %v2191
      %v2193 = vpop.f32.mrf.mxu0
      %2194 = vmatprep.mubr.f32.mxu0 0.0
      %2195 = vmatmul.mubr.f32.gmra.mxu0 %v2025
      %v2196 = vpop.f32.mrf.mxu0
      %v2197 = vadd.f32 0.0, %v2196
      %v2198 = vpop.f32.mrf.mxu0
      %2199 = vmatprep.mubr.f32.mxu0 0.0
      %2200 = vmatmul.mubr.f32.gmra.mxu0 %v2028
      %v2201 = vpop.f32.mrf.mxu0
      %v2202 = vadd.f32 0.0, %v2201
      %v2203 = vpop.f32.mrf.mxu0
      %2204 = vmatprep.mubr.f32.mxu0 0.0
      %2205 = vmatmul.mubr.f32.gmra.mxu0 %v2031
      %v2206 = vpop.f32.mrf.mxu0
      %v2207 = vadd.f32 0.0, %v2206
      %v2208 = vpop.f32.mrf.mxu0
      %2209 = vmatprep.mubr.f32.mxu0 0.0
      %2210 = vmatmul.mubr.f32.gmra.mxu0 %v2034
      %v2211 = vpop.f32.mrf.mxu0
      %v2212 = vadd.f32 0.0, %v2211
      %v2213 = vpop.f32.mrf.mxu0
      %2214 = vmatprep.mubr.f32.mxu0 0.0
      %2215 = vmatmul.mubr.f32.gmra.mxu0 %v2037
      %v2216 = vpop.f32.mrf.mxu0
      %v2217 = vadd.f32 0.0, %v2216
      %v2218 = vpop.f32.mrf.mxu0
      %2219 = vmatprep.mubr.f32.mxu0 0.0
      %2220 = vmatmul.mubr.f32.gmra.mxu0 %v2040
      %v2221 = vpop.f32.mrf.mxu0
      %v2222 = vadd.f32 0.0, %v2221
      %v2223 = vpop.f32.mrf.mxu0
      %2224 = vmatprep.mubr.f32.mxu0 0.0
      %2225 = vmatmul.mubr.f32.gmra.mxu0 %v2043
      %v2226 = vpop.f32.mrf.mxu0
      %v2227 = vadd.f32 0.0, %v2226
      %v2228 = vpop.f32.mrf.mxu0
      %2229 = vmatprep.mubr.f32.mxu0 0.0
      %2230 = vmatmul.mubr.f32.gmra.mxu0 %v2046
      %v2231 = vpop.f32.mrf.mxu0
      %v2232 = vadd.f32 0.0, %v2231
      %v2233 = vpop.f32.mrf.mxu0
      %2234 = vmatprep.mubr.f32.mxu0 0.0
      %2235 = vmatmul.mubr.f32.gmra.mxu0 %v2049
      %v2236 = vpop.f32.mrf.mxu0
      %v2237 = vadd.f32 0.0, %v2236
      %v2238 = vpop.f32.mrf.mxu0
      %2239 = vmatprep.mubr.f32.mxu0 0.0
      %2240 = vmatmul.mubr.f32.gmra.mxu0 %v2052
      %v2241 = vpop.f32.mrf.mxu0
      %v2242 = vadd.f32 0.0, %v2241
      %v2243 = vpop.f32.mrf.mxu0
      %2244 = vmatprep.mubr.f32.mxu0 0.0
      %2245 = vmatmul.mubr.f32.gmra.mxu0 %v2055
      %v2246 = vpop.f32.mrf.mxu0
      %v2247 = vadd.f32 0.0, %v2246
      %v2248 = vpop.f32.mrf.mxu0
      %2249 = vmatprep.mubr.f32.mxu0 0.0
      %2250 = vmatmul.mubr.f32.gmra.mxu0 %v2058
      %v2251 = vpop.f32.mrf.mxu0
      %v2252 = vadd.f32 0.0, %v2251
      %v2253 = vpop.f32.mrf.mxu0
      %2254 = vmatprep.mubr.f32.mxu0 0.0
      %2255 = vmatmul.mubr.f32.gmra.mxu0 %v2061
      %v2256 = vpop.f32.mrf.mxu0
      %v2257 = vadd.f32 0.0, %v2256
      %v2258 = vpop.f32.mrf.mxu0
      %2259 = vmatprep.mubr.f32.mxu0 0.0
      %2260 = vmatmul.mubr.f32.gmra.mxu0 %v2064
      %v2261 = vpop.f32.mrf.mxu0
      %v2262 = vadd.f32 0.0, %v2261
      %v2263 = vpop.f32.mrf.mxu0
      %2264 = vmatprep.mubr.f32.mxu0 0.0
      %2265 = vmatmul.mubr.f32.gmra.mxu0 %v2067
      %v2266 = vpop.f32.mrf.mxu0
      %v2267 = vadd.f32 0.0, %v2266
      %v2268 = vpop.f32.mrf.mxu0
      %2269 = vmatprep.mubr.f32.mxu0 0.0
      %2270 = vmatmul.mubr.f32.gmra.mxu0 %v2070
      %v2271 = vpop.f32.mrf.mxu0
      %v2272 = vadd.f32 0.0, %v2271
      %v2273 = vpop.f32.mrf.mxu0
      %2274 = vmatprep.mubr.f32.mxu0 0.0
      %2275 = vmatmul.mubr.f32.gmra.mxu0 %v2073
      %v2276 = vpop.f32.mrf.mxu0
      %v2277 = vadd.f32 0.0, %v2276
      %v2278 = vpop.f32.mrf.mxu0
      %2279 = vmatprep.mubr.f32.mxu0 0.0
      %2280 = vmatmul.mubr.f32.gmra.mxu0 %v2076
      %v2281 = vpop.f32.mrf.mxu0
      %v2282 = vadd.f32 0.0, %v2281
      %v2283 = vpop.f32.mrf.mxu0
      %2284 = vmatprep.mubr.f32.mxu0 0.0
      %2285 = vmatmul.mubr.f32.gmra.mxu0 %v2079
      %v2286 = vpop.f32.mrf.mxu0
      %v2287 = vadd.f32 0.0, %v2286
      %v2288 = vpop.f32.mrf.mxu0
      %2289 = vmatprep.mubr.f32.mxu0 0.0
      %2290 = vmatmul.mubr.f32.gmra.mxu0 %v2082
      %v2291 = vpop.f32.mrf.mxu0
      %v2292 = vadd.f32 0.0, %v2291
      %v2293 = vpop.f32.mrf.mxu0
      %2294 = vmatprep.mubr.f32.mxu0 0.0
      %2295 = vmatmul.mubr.f32.gmra.mxu0 %v2085
      %v2296 = vpop.f32.mrf.mxu0
      %v2297 = vadd.f32 0.0, %v2296
      %v2298 = vpop.f32.mrf.mxu0
      %2299 = vmatprep.mubr.f32.mxu0 0.0
      %2300 = vmatmul.mubr.f32.gmra.mxu0 %v2088
      %v2301 = vpop.f32.mrf.mxu0
      %v2302 = vadd.f32 0.0, %v2301
      %v2303 = vpop.f32.mrf.mxu0
      %2304 = vmatprep.mubr.f32.mxu0 0.0
      %2305 = vmatmul.mubr.f32.gmra.mxu0 %v2091
      %v2306 = vpop.f32.mrf.mxu0
      %v2307 = vadd.f32 0.0, %v2306
      %v2308 = vpop.f32.mrf.mxu0
      %2309 = vmatprep.mubr.f32.mxu0 0.0
      %2310 = vmatmul.mubr.f32.gmra.mxu0 %v2094
      %v2311 = vpop.f32.mrf.mxu0
      %v2312 = vadd.f32 0.0, %v2311
      %v2313 = vpop.f32.mrf.mxu0
      %2314 = vmatprep.mubr.f32.mxu0 0.0
      %2315 = vmatmul.mubr.f32.gmra.mxu0 %v2097
      %v2316 = vpop.f32.mrf.mxu0
      %v2317 = vadd.f32 0.0, %v2316
      %v2318 = vpop.f32.mrf.mxu0
      %2319 = vmatprep.mubr.f32.mxu0 0.0
      %2320 = vmatmul.mubr.f32.gmra.mxu0 %v2100
      %v2321 = vpop.f32.mrf.mxu0
      %v2322 = vadd.f32 0.0, %v2321
      %v2323 = vpop.f32.mrf.mxu0
      %2324 = vmatprep.mubr.f32.mxu0 0.0
      %2325 = vmatmul.mubr.f32.gmra.mxu0 %v2103
      %v2326 = vpop.f32.mrf.mxu0
      %v2327 = vadd.f32 0.0, %v2326
      %v2328 = vpop.f32.mrf.mxu0
      %2329 = vmatprep.mubr.f32.mxu0 0.0
      %2330 = vmatmul.mubr.f32.gmra.mxu0 %v2106
      %v2331 = vpop.f32.mrf.mxu0
      %v2332 = vadd.f32 0.0, %v2331
      %v2333 = vpop.f32.mrf.mxu0
      %2334 = vmatprep.mubr.f32.mxu0 0.0
      %2335 = vmatmul.mubr.f32.gmra.mxu0 %v2109
      %v2336 = vpop.f32.mrf.mxu0
      %v2337 = vadd.f32 0.0, %v2336
      %v2338 = vpop.f32.mrf.mxu0
      %2339 = vdwg.mxu0
      %v2340 = vld [vmem:[%s2] sm:$0x1]
      %v2342 = vlaneseq
      %v2343 = vshrl.u32 %v2342, 7
      %v2344 = vsub.s32 0, %v2343
      %v2345 = vrot.slane %v2340, %v2344
      %v2347 = vmul.f32 %v2182, %v2345
      %v2348 = vmul.f32 %v2187, %v2345
      %v2349 = vmul.f32 %v2192, %v2345
      %v2350 = vmul.f32 %v2197, %v2345
      %v2351 = vmul.f32 %v2202, %v2345
      %v2352 = vmul.f32 %v2207, %v2345
      %v2353 = vmul.f32 %v2212, %v2345
      %v2354 = vmul.f32 %v2217, %v2345
      %v2355 = vmul.f32 %v2222, %v2345
      %v2356 = vmul.f32 %v2227, %v2345
      %v2357 = vmul.f32 %v2232, %v2345
      %v2358 = vmul.f32 %v2237, %v2345
      %v2359 = vmul.f32 %v2242, %v2345
      %v2360 = vmul.f32 %v2247, %v2345
      %v2361 = vmul.f32 %v2252, %v2345
      %v2362 = vmul.f32 %v2257, %v2345
      %v2363 = vmul.f32 %v2262, %v2345
      %v2364 = vmul.f32 %v2267, %v2345
      %v2365 = vmul.f32 %v2272, %v2345
      %v2366 = vmul.f32 %v2277, %v2345
      %v2367 = vmul.f32 %v2282, %v2345
      %v2368 = vmul.f32 %v2287, %v2345
      %v2369 = vmul.f32 %v2292, %v2345
      %v2370 = vmul.f32 %v2297, %v2345
      %v2371 = vmul.f32 %v2302, %v2345
      %v2372 = vmul.f32 %v2307, %v2345
      %v2373 = vmul.f32 %v2312, %v2345
      %v2374 = vmul.f32 %v2317, %v2345
      %v2375 = vmul.f32 %v2322, %v2345
      %v2376 = vmul.f32 %v2327, %v2345
      %v2377 = vmul.f32 %v2332, %v2345
      %v2378 = vmul.f32 %v2337, %v2345
      %v2379 = vld [vmem:[%s3] sm:$0x1]
      %v2381 = vlaneseq
      %v2382 = vshrl.u32 %v2381, 7
      %v2383 = vsub.s32 0, %v2382
      %v2384 = vrot.slane %v2379, %v2383
      %v2386 = vadd.f32 %v2347, %v2384
      %v2387 = vadd.f32 %v2348, %v2384
      %v2388 = vadd.f32 %v2349, %v2384
      %v2389 = vadd.f32 %v2350, %v2384
      %v2390 = vadd.f32 %v2351, %v2384
      %v2391 = vadd.f32 %v2352, %v2384
      %v2392 = vadd.f32 %v2353, %v2384
      %v2393 = vadd.f32 %v2354, %v2384
      %v2394 = vadd.f32 %v2355, %v2384
      %v2395 = vadd.f32 %v2356, %v2384
      %v2396 = vadd.f32 %v2357, %v2384
      %v2397 = vadd.f32 %v2358, %v2384
      %v2398 = vadd.f32 %v2359, %v2384
      %v2399 = vadd.f32 %v2360, %v2384
      %v2400 = vadd.f32 %v2361, %v2384
      %v2401 = vadd.f32 %v2362, %v2384
      %v2402 = vadd.f32 %v2363, %v2384
      %v2403 = vadd.f32 %v2364, %v2384
      %v2404 = vadd.f32 %v2365, %v2384
      %v2405 = vadd.f32 %v2366, %v2384
      %v2406 = vadd.f32 %v2367, %v2384
      %v2407 = vadd.f32 %v2368, %v2384
      %v2408 = vadd.f32 %v2369, %v2384
      %v2409 = vadd.f32 %v2370, %v2384
      %v2410 = vadd.f32 %v2371, %v2384
      %v2411 = vadd.f32 %v2372, %v2384
      %v2412 = vadd.f32 %v2373, %v2384
      %v2413 = vadd.f32 %v2374, %v2384
      %v2414 = vadd.f32 %v2375, %v2384
      %v2415 = vadd.f32 %v2376, %v2384
      %v2416 = vadd.f32 %v2377, %v2384
      %v2417 = vadd.f32 %v2378, %v2384
      %v2418 = vmax.f32 %v2386, 0.0
      %v2419 = vmax.f32 %v2387, 0.0
      %v2420 = vmax.f32 %v2388, 0.0
      %v2421 = vmax.f32 %v2389, 0.0
      %v2422 = vmax.f32 %v2390, 0.0
      %v2423 = vmax.f32 %v2391, 0.0
      %v2424 = vmax.f32 %v2392, 0.0
      %v2425 = vmax.f32 %v2393, 0.0
      %v2426 = vmax.f32 %v2394, 0.0
      %v2427 = vmax.f32 %v2395, 0.0
      %v2428 = vmax.f32 %v2396, 0.0
      %v2429 = vmax.f32 %v2397, 0.0
      %v2430 = vmax.f32 %v2398, 0.0
      %v2431 = vmax.f32 %v2399, 0.0
      %v2432 = vmax.f32 %v2400, 0.0
      %v2433 = vmax.f32 %v2401, 0.0
      %v2434 = vmax.f32 %v2402, 0.0
      %v2435 = vmax.f32 %v2403, 0.0
      %v2436 = vmax.f32 %v2404, 0.0
      %v2437 = vmax.f32 %v2405, 0.0
      %v2438 = vmax.f32 %v2406, 0.0
      %v2439 = vmax.f32 %v2407, 0.0
      %v2440 = vmax.f32 %v2408, 0.0
      %v2441 = vmax.f32 %v2409, 0.0
      %v2442 = vmax.f32 %v2410, 0.0
      %v2443 = vmax.f32 %v2411, 0.0
      %v2444 = vmax.f32 %v2412, 0.0
      %v2445 = vmax.f32 %v2413, 0.0
      %v2446 = vmax.f32 %v2414, 0.0
      %v2447 = vmax.f32 %v2415, 0.0
      %v2448 = vmax.f32 %v2416, 0.0
      %v2449 = vmax.f32 %v2417, 0.0
      %2450 = vst [vmem:[%s219] sm:$0xff] %v2418
      %2451 = vst [vmem:[%s219 + $0x8] sm:$0xff] %v2419
      %2452 = vst [vmem:[%s219 + $0x10] sm:$0xff] %v2420
      %2453 = vst [vmem:[%s219 + $0x18] sm:$0xff] %v2421
      %2454 = vst [vmem:[%s219 + $0x20] sm:$0xff] %v2422
      %2455 = vst [vmem:[%s219 + $0x28] sm:$0xff] %v2423
      %2456 = vst [vmem:[%s219 + $0x30] sm:$0xff] %v2424
      %2457 = vst [vmem:[%s219 + $0x38] sm:$0xff] %v2425
      %2458 = vst [vmem:[%s219 + $0x40] sm:$0xff] %v2426
      %2459 = vst [vmem:[%s219 + $0x48] sm:$0xff] %v2427
      %2460 = vst [vmem:[%s219 + $0x50] sm:$0xff] %v2428
      %2461 = vst [vmem:[%s219 + $0x58] sm:$0xff] %v2429
      %2462 = vst [vmem:[%s219 + $0x60] sm:$0xff] %v2430
      %2463 = vst [vmem:[%s219 + $0x68] sm:$0xff] %v2431
      %2464 = vst [vmem:[%s219 + $0x70] sm:$0xff] %v2432
      %2465 = vst [vmem:[%s219 + $0x78] sm:$0xff] %v2433
      %2466 = vst [vmem:[%s219 + $0x80] sm:$0xff] %v2434
      %2467 = vst [vmem:[%s219 + $0x88] sm:$0xff] %v2435
      %2468 = vst [vmem:[%s219 + $0x90] sm:$0xff] %v2436
      %2469 = vst [vmem:[%s219 + $0x98] sm:$0xff] %v2437
      %2470 = vst [vmem:[%s219 + $0xa0] sm:$0xff] %v2438
      %2471 = vst [vmem:[%s219 + $0xa8] sm:$0xff] %v2439
      %2472 = vst [vmem:[%s219 + $0xb0] sm:$0xff] %v2440
      %2473 = vst [vmem:[%s219 + $0xb8] sm:$0xff] %v2441
      %2474 = vst [vmem:[%s219 + $0xc0] sm:$0xff] %v2442
      %2475 = vst [vmem:[%s219 + $0xc8] sm:$0xff] %v2443
      %2476 = vst [vmem:[%s219 + $0xd0] sm:$0xff] %v2444
      %2477 = vst [vmem:[%s219 + $0xd8] sm:$0xff] %v2445
      %2478 = vst [vmem:[%s219 + $0xe0] sm:$0xff] %v2446
      %2479 = vst [vmem:[%s219 + $0xe8] sm:$0xff] %v2447
      %2480 = vst [vmem:[%s219 + $0xf0] sm:$0xff] %v2448
      %2481 = vst [vmem:[%s219 + $0xf8] sm:$0xff] %v2449
      %s2482 = smul.u32 32, %s20
      %p2483 = scmp.lt.s32.totalorder %s19, 1
      %s2484 = scalar_select %p2483, %s19, 1
      %p2485 = scmp.lt.s32.totalorder %s2482, 31
      %s2486 = scalar_select %p2485, %s2482, 31
      %s2487 = smul.addr %s2484, 32
      %s2488 = sadd.s32 %s2486, %s2487
      %s2489 = smul.addr %s2488, 8
      %s2490 = scalar_lea.vmem %s4, %s2489
      // Predicated region
      $region45: #{conv_block_forward.1} parent=35 // pred_check
        %p2491 = pneg %p136
      $region46: #{conv_block_forward.1} parent=35 // pred_check_branch
        %2493 = sbr.rel (%p2491) target = $region48
      $region47: #{conv_block_forward.1} parent=35 // pred_region
        %s2494 = smul.u32 32, %s20
      $region48: #{conv_block_forward.1} parent=35 // pred_fallthru
        _
    $region36: #{conv_block_forward.1} parent=5 // pred_fallthru
      _
    %p2495 = scmp.le.s32.totalorder 2, %s10
    // Predicated region
    $region49: #{conv_block_forward.1} parent=5 // pred_check
      %p2496 = pneg %p2495
    $region50: #{conv_block_forward.1} parent=5 // pred_check_branch
      %2498 = sbr.rel (%p2496) target = $region52
    $region51: #{conv_block_forward.1} parent=5 // pred_region
      %s2499 = ssub.s32 %s10, 2
      // Predicated region
      $region53: #{conv_block_forward.1} parent=51 // pred_check
        %p2500 = pneg %p142
      $region54: #{conv_block_forward.1} parent=51 // pred_check_branch
        %2502 = sbr.rel (%p2500) target = $region56
      $region55: #{conv_block_forward.1} parent=51 // pred_region
        %s2503 = smul.u32 32, %s22
        %p2504 = scmp.lt.s32.totalorder %s21, 1
        %s2505 = scalar_select %p2504, %s21, 1
        %p2506 = scmp.lt.s32.totalorder %s2503, 31
        %s2507 = scalar_select %p2506, %s2503, 31
        %s2508 = smul.addr %s2505, 32
        %s2509 = sadd.s32 %s2507, %s2508
        %s2510 = smul.addr %s2509, 8
        %s2511 = scalar_lea.vmem %s4, %s2510
      $region56: #{conv_block_forward.1} parent=51 // pred_fallthru
        _
    $region52: #{conv_block_forward.1} parent=5 // pred_fallthru
      _
  $region6: #{conv_block_forward.1} parent=0 // loop_footer
    %s14 = sadd.s32 1, %s10
  $region7: #{conv_block_forward.1} parent=0 // loop_footer_branch
    %9 = sbr.rel target = $region3
  $region8: #{conv_block_forward.1} parent=0 // loop_exit
    _

</llo_original>
